<compile_context>
chip_gen: v7x
topology: tpu7x:2x2x1
jax: 0.10.0
libtpu: 0.0.40
codegen_flags: <defaults>
</compile_context>

<pallas_src>
import jax
import jax.numpy as jnp
from jax import lax
from jax.experimental import pallas as pl
from jax.experimental.pallas import tpu as pltpu


# Compact-input patch shifts, in the order they are concatenated along the
# matmul contraction (K) axis: x4[:, t*Cin:(t+1)*Cin] = x[r+dr_t, c+dc_t, :].
_TAPS = ((0, 0), (0, 1), (1, 0), (1, 1))


def _phase_weight_slabs(w_t, cout_p):
    """Per-row-parity weight slabs for the polyphase s=2 transposed conv.

    w_t: (Cin, Cout, 3, 3) PyTorch ConvTranspose2d weight.
    Returns (w0, w1) bf16, shapes (2*Cin, 2*Cout_p) and (4*Cin, 2*Cout_p):
      w_a[t*Cin + ic, b*Cout_p + oc] = w_t[ic, oc, a+1-2*dr_t, b+1-2*dc_t]
    (zero where the kernel tap index falls outside [0, 2]).
    """
    cin, cout = w_t.shape[0], w_t.shape[1]

    def build(a, taps):
        slab = jnp.zeros((len(taps) * cin, 2 * cout_p), jnp.float32)
        for t, (dr, dc) in enumerate(taps):
            kh = a + 1 - 2 * dr
            if not 0 <= kh <= 2:
                continue
            for b in (0, 1):
                kw = b + 1 - 2 * dc
                if 0 <= kw <= 2:
                    slab = slab.at[t * cin:(t + 1) * cin,
                                   b * cout_p:b * cout_p + cout].set(w_t[:, :, kh, kw])
        return slab.astype(jnp.bfloat16)

    # Row parity 0 only sees the dr=0 taps; row parity 1 sees all four.
    return build(0, _TAPS[:2]), build(1, _TAPS)


def _upsample_block_kernel(xp_ref, w0_ref, w1_ref, y_ref):
    # xp_ref: (1, H+1, W+1, Cin)   bf16 compact input, +1 zero pad bottom/right
    # w0_ref: (2*Cin, 2*Cout_p)    bf16 row-parity-0 weights
    # w1_ref: (4*Cin, 2*Cout_p)    bf16 row-parity-1 weights
    # y_ref : (1, H, 2, W, 2*Cout_p)    NHWC-ordered output (see wrapper)
    H = xp_ref.shape[1] - 1
    W = xp_ref.shape[2] - 1
    cin = xp_ref.shape[3]
    c2 = y_ref.shape[4]                    # 2 * Cout_p
    cout_p = c2 // 2

    xp = xp_ref[0]                          # (H+1, W+1, Cin) bf16

    # Shifted compact patches concatenated ONCE along the contraction axis.
    patches = [xp[dr:dr + H, dc:dc + W, :].reshape(H * W, cin) for dr, dc in _TAPS]
    x4 = jnp.concatenate(patches, axis=-1)  # (H*W, 4*Cin)  row-parity-1 LHS
    x2 = x4[:, :2 * cin]                    # (H*W, 2*Cin)  row-parity-0 LHS

    # Two MXU matmuls, f32 accumulation:
    #   y_a[r*W + c, b*Cout_p + oc] == conv_transpose(x)[2r+a, 2c+b, oc]
    y0 = jnp.dot(x2, w0_ref[...], preferred_element_type=jnp.float32)
    y1 = jnp.dot(x4, w1_ref[...], preferred_element_type=jnp.float32)

    # InstanceNorm2d stats per channel over the full (2H, 2W) extent.
    # Sum and sum-of-squares of each slab are taken together (single pass).
    s = jnp.sum(y0, axis=0, keepdims=True) + jnp.sum(y1, axis=0, keepdims=True)
    q = (jnp.sum(y0 * y0, axis=0, keepdims=True)
         + jnp.sum(y1 * y1, axis=0, keepdims=True))
    s1 = s[:, :cout_p] + s[:, cout_p:]      # fold the two column parities
    q1 = q[:, :cout_p] + q[:, cout_p:]
    inv_cnt = 1.0 / (4.0 * H * W)
    mean = s1 * inv_cnt
    var = jnp.maximum(q1 * inv_cnt - mean * mean, 0.0)
    inv_std = lax.rsqrt(var + 1e-5)
    shift = -mean * inv_std
    scale2 = jnp.concatenate([inv_std, inv_std], axis=-1)   # (1, 2*Cout_p)
    shift2 = jnp.concatenate([shift, shift], axis=-1)

    # Fused normalize + ReLU; one lane-dense store per row parity.
    out0 = jnp.maximum(y0 * scale2 + shift2, 0.0).astype(y_ref.dtype)
    out1 = jnp.maximum(y1 * scale2 + shift2, 0.0).astype(y_ref.dtype)
    y_ref[0, :, 0, :, :] = out0.reshape(H, W, c2)
    y_ref[0, :, 1, :, :] = out1.reshape(H, W, c2)


def upsample_block(x_nhwc, w_t, *, out_dtype=jnp.bfloat16):
    """ConvTranspose2d(3,2,1,op=1,bias=False) -> InstanceNorm2d -> ReLU.

    x_nhwc: (N, H, W, Cin)  NHWC (TPU-native layout).
    w_t:    (Cin, Cout, 3, 3) PyTorch ConvTranspose2d weight.
    Returns (N, 2H, 2W, Cout) NHWC in `out_dtype`.
    """
    N, H, W, cin = x_nhwc.shape
    cout = w_t.shape[1]
    cout_p = ((cout + 127) // 128) * 128            # lane-dense output channels
    w0, w1 = _phase_weight_slabs(w_t, cout_p)

    # bf16 input (halves input DMA bytes); +1 zero pad bottom/right only.
    xpad = jnp.pad(x_nhwc.astype(jnp.bfloat16), ((0, 0), (0, 1), (0, 1), (0, 0)))

    out_itemsize = jnp.dtype(out_dtype).itemsize
    # Rough VMEM need: double-buffered input/weight/output blocks + LHS / f32
    # accumulator temporaries.  Cap well below v5e/v6e physical; v7x production
    # shapes need the spatial-blocking TODO above.
    est = (2 * (H + 1) * (W + 1) * cin * 2
           + 2 * 6 * cin * 2 * cout_p * 2
           + 2 * (4 * H * W * cout_p) * out_itemsize
           + (H * W) * 6 * cin * 2
           + 2 * (H * W) * 2 * cout_p * 4)
    vmem_limit = int(min(max(2 * est, 32 * 1024 * 1024), 96 * 1024 * 1024))

    out = pl.pallas_call(
        _upsample_block_kernel,
        out_shape=jax.ShapeDtypeStruct((N, H, 2, W, 2 * cout_p), out_dtype),
        grid_spec=pltpu.PrefetchScalarGridSpec(
            num_scalar_prefetch=0,
            grid=(N,),
            in_specs=[
                pl.BlockSpec((1, H + 1, W + 1, cin), lambda n: (n, 0, 0, 0)),
                pl.BlockSpec((2 * cin, 2 * cout_p), lambda n: (0, 0)),
                pl.BlockSpec((4 * cin, 2 * cout_p), lambda n: (0, 0)),
            ],
            out_specs=pl.BlockSpec((1, H, 2, W, 2 * cout_p),
                                   lambda n: (n, 0, 0, 0, 0)),
        ),
        compiler_params=pltpu.CompilerParams(
            dimension_semantics=("parallel",),
            vmem_limit_bytes=vmem_limit,
        ),
    )(xpad, w0, w1)

    # Linear order (n, r, a, c, b, oc) == NHWC -> pure (free) reshape, no transpose.
    out = out.reshape(N, 2 * H, 2 * W, cout_p)
    if cout_p != cout:
        out = out[..., :cout]   # no-op copy only when Cout isn't lane-aligned
    return out


def upsample_blocks(x_nhwc, weights, *, out_dtype=jnp.bfloat16):
    """UpsampleBlocks: chained [ConvTranspose2d -> InstanceNorm2d -> ReLU]."""
    y = x_nhwc
    for w_t in weights:
        y = upsample_block(y, w_t, out_dtype=out_dtype)
    return y


upsample_block_jit = jax.jit(upsample_block, static_argnames=("out_dtype",))


def upsample_block_ref(x_nchw, w_t):
    """Pure-JAX f32 reference: ConvTranspose2d -> InstanceNorm2d -> ReLU (NCHW)."""
    w_conv = jnp.flip(w_t, axis=(2, 3)).transpose(1, 0, 2, 3)   # (Cout, Cin, 3, 3)
    y = lax.conv_general_dilated(
        x_nchw, w_conv,
        window_strides=(1, 1),
        padding=[(1, 2), (1, 2)],
        lhs_dilation=(2, 2),
        dimension_numbers=("NCHW", "OIHW", "NCHW"),
    )
    mean = jnp.mean(y, axis=(2, 3), keepdims=True)
    var = jnp.mean((y - mean) ** 2, axis=(2, 3), keepdims=True)
    yn = (y - mean) * lax.rsqrt(var + 1e-5)
    return jnp.maximum(yn, 0.0)


if __name__ == "__main__":
    key = jax.random.PRNGKey(0)
    kx, kw1, kw2 = jax.random.split(key, 3)

    N, cin, cout, H, W = 2, 4, 8, 16, 16
    x_nchw = jax.random.normal(kx, (N, cin, H, W), dtype=jnp.float32)
    w1 = 0.1 * jax.random.normal(kw1, (cin, cout, 3, 3), dtype=jnp.float32)
    x_nhwc = x_nchw.transpose(0, 2, 3, 1)

    # Single UpsampleBlock.
    out = jax.block_until_ready(upsample_block_jit(x_nhwc, w1))
    assert out.shape == (N, 2 * H, 2 * W, cout), out.shape

    ref = upsample_block_ref(x_nchw, w1).transpose(0, 2, 3, 1)   # NCHW -> NHWC
    ref = jax.block_until_ready(ref)
    out_f32 = out.astype(jnp.float32)
    err = float(jnp.max(jnp.abs(out_f32 - ref)))
    assert jnp.allclose(out_f32, ref, rtol=5e-2, atol=5e-2), err

    # Two-layer UpsampleBlocks chain (hidden_sizes = [4, 8, 8]).
    w2 = 0.1 * jax.random.normal(kw2, (cout, cout, 3, 3), dtype=jnp.float32)
    out2 = jax.block_until_ready(jax.jit(upsample_blocks)(x_nhwc, (w1, w2)))
    assert out2.shape == (N, 4 * H, 4 * W, cout), out2.shape
    ref2 = upsample_block_ref(ref.transpose(0, 3, 1, 2), w2).transpose(0, 2, 3, 1)
    ref2 = jax.block_until_ready(ref2)
    err2 = float(jnp.max(jnp.abs(out2.astype(jnp.float32) - ref2)))
    assert jnp.allclose(out2.astype(jnp.float32), ref2, rtol=1e-1, atol=1e-1), err2

    print("KERNEL_OK")
</pallas_src>

<mosaic_0001>
module attributes {stable_mosaic.version = 11 : i64} {
  func.func @_upsample_block_kernel(%arg0: i32, %arg1: memref<1x17x17x4xbf16, #tpu.memory_space<vmem>>, %arg2: memref<8x256xbf16, #tpu.memory_space<vmem>>, %arg3: memref<16x256xbf16, #tpu.memory_space<vmem>>, %arg4: memref<1x16x2x16x256xbf16, #tpu.memory_space<vmem>>) attributes {dimension_semantics = [#tpu.dimension_semantics<parallel>], iteration_bounds = array<i64: 2>, scalar_prefetch = 0 : i64, scratch_operands = 0 : i64, tpu.core_type = #tpu.core_type<tc>, window_params = [{transform_indices = @transform_0, window_bounds = array<i64: 1, 17, 17, 4>}, {pipeline_mode = #tpu.pipeline_mode<synchronous>, transform_indices = @transform_1, window_bounds = array<i64: 8, 256>}, {pipeline_mode = #tpu.pipeline_mode<synchronous>, transform_indices = @transform_2, window_bounds = array<i64: 16, 256>}, {transform_indices = @transform_3, window_bounds = array<i64: 1, 16, 2, 16, 256>}]} {
    %c0 = arith.constant 0 : index
    %c0_0 = arith.constant 0 : index
    %c0_1 = arith.constant 0 : index
    %c0_2 = arith.constant 0 : index
    %0 = vector.load %arg1[%c0, %c0_0, %c0_1, %c0_2] : memref<1x17x17x4xbf16, #tpu.memory_space<vmem>>, vector<1x17x17x4xbf16>
    %1 = vector.shape_cast %0 : vector<1x17x17x4xbf16> to vector<17x17x4xbf16>
    %2 = vector.extract_strided_slice %1 {offsets = [0, 0, 0], sizes = [16, 16, 4], strides = [1, 1, 1]} : vector<17x17x4xbf16> to vector<16x16x4xbf16>
    %3 = vector.shape_cast %2 : vector<16x16x4xbf16> to vector<256x4xbf16>
    %4 = vector.extract_strided_slice %1 {offsets = [0, 1, 0], sizes = [16, 16, 4], strides = [1, 1, 1]} : vector<17x17x4xbf16> to vector<16x16x4xbf16>
    %5 = vector.shape_cast %4 : vector<16x16x4xbf16> to vector<256x4xbf16>
    %6 = vector.extract_strided_slice %1 {offsets = [1, 0, 0], sizes = [16, 16, 4], strides = [1, 1, 1]} : vector<17x17x4xbf16> to vector<16x16x4xbf16>
    %7 = vector.shape_cast %6 : vector<16x16x4xbf16> to vector<256x4xbf16>
    %8 = vector.extract_strided_slice %1 {offsets = [1, 1, 0], sizes = [16, 16, 4], strides = [1, 1, 1]} : vector<17x17x4xbf16> to vector<16x16x4xbf16>
    %9 = vector.shape_cast %8 : vector<16x16x4xbf16> to vector<256x4xbf16>
    %10 = tpu.concatenate %3, %5, %7, %9 in 1 : vector<256x4xbf16>, vector<256x4xbf16>, vector<256x4xbf16>, vector<256x4xbf16> -> vector<256x16xbf16>
    %11 = vector.extract_strided_slice %10 {offsets = [0, 0], sizes = [256, 8], strides = [1, 1]} : vector<256x16xbf16> to vector<256x8xbf16>
    %c0_3 = arith.constant 0 : index
    %c0_4 = arith.constant 0 : index
    %12 = vector.load %arg2[%c0_3, %c0_4] : memref<8x256xbf16, #tpu.memory_space<vmem>>, vector<8x256xbf16>
    %cst = arith.constant dense<0.000000e+00> : vector<256x256xf32>
    %13 = tpu.matmul %11, %12, %cst {dimension_numbers = #tpu.dot_dimension_numbers<[1], [0], [0], [1], [0, 0, 1, 1], [], []>} : vector<256x8xbf16>, vector<8x256xbf16>, vector<256x256xf32> -> vector<256x256xf32>
    %c0_5 = arith.constant 0 : index
    %c0_6 = arith.constant 0 : index
    %14 = vector.load %arg3[%c0_5, %c0_6] : memref<16x256xbf16, #tpu.memory_space<vmem>>, vector<16x256xbf16>
    %cst_7 = arith.constant dense<0.000000e+00> : vector<256x256xf32>
    %15 = tpu.matmul %10, %14, %cst_7 {dimension_numbers = #tpu.dot_dimension_numbers<[1], [0], [0], [1], [0, 0, 1, 1], [], []>} : vector<256x16xbf16>, vector<16x256xbf16>, vector<256x256xf32> -> vector<256x256xf32>
    %cst_8 = arith.constant dense<0.000000e+00> : vector<256xf32>
    %16 = vector.multi_reduction <add>, %13, %cst_8 [0] : vector<256x256xf32> to vector<256xf32>
    %17 = vector.shape_cast %16 : vector<256xf32> to vector<1x256xf32>
    %cst_9 = arith.constant dense<0.000000e+00> : vector<256xf32>
    %18 = vector.multi_reduction <add>, %15, %cst_9 [0] : vector<256x256xf32> to vector<256xf32>
    %19 = vector.shape_cast %18 : vector<256xf32> to vector<1x256xf32>
    %20 = arith.addf %17, %19 : vector<1x256xf32>
    %21 = arith.mulf %13, %13 : vector<256x256xf32>
    %cst_10 = arith.constant dense<0.000000e+00> : vector<256xf32>
    %22 = vector.multi_reduction <add>, %21, %cst_10 [0] : vector<256x256xf32> to vector<256xf32>
    %23 = vector.shape_cast %22 : vector<256xf32> to vector<1x256xf32>
    %24 = arith.mulf %15, %15 : vector<256x256xf32>
    %cst_11 = arith.constant dense<0.000000e+00> : vector<256xf32>
    %25 = vector.multi_reduction <add>, %24, %cst_11 [0] : vector<256x256xf32> to vector<256xf32>
    %26 = vector.shape_cast %25 : vector<256xf32> to vector<1x256xf32>
    %27 = arith.addf %23, %26 : vector<1x256xf32>
    %28 = vector.extract_strided_slice %20 {offsets = [0, 0], sizes = [1, 128], strides = [1, 1]} : vector<1x256xf32> to vector<1x128xf32>
    %29 = vector.extract_strided_slice %20 {offsets = [0, 128], sizes = [1, 128], strides = [1, 1]} : vector<1x256xf32> to vector<1x128xf32>
    %30 = arith.addf %28, %29 : vector<1x128xf32>
    %31 = vector.extract_strided_slice %27 {offsets = [0, 0], sizes = [1, 128], strides = [1, 1]} : vector<1x256xf32> to vector<1x128xf32>
    %32 = vector.extract_strided_slice %27 {offsets = [0, 128], sizes = [1, 128], strides = [1, 1]} : vector<1x256xf32> to vector<1x128xf32>
    %33 = arith.addf %31, %32 : vector<1x128xf32>
    %cst_12 = arith.constant 9.765625E-4 : f32
    %34 = vector.broadcast %cst_12 : f32 to vector<1x128xf32>
    %35 = arith.mulf %30, %34 : vector<1x128xf32>
    %cst_13 = arith.constant 9.765625E-4 : f32
    %36 = vector.broadcast %cst_13 : f32 to vector<1x128xf32>
    %37 = arith.mulf %33, %36 : vector<1x128xf32>
    %38 = arith.mulf %35, %35 : vector<1x128xf32>
    %39 = arith.subf %37, %38 : vector<1x128xf32>
    %cst_14 = arith.constant 0.000000e+00 : f32
    %40 = vector.broadcast %cst_14 : f32 to vector<1x128xf32>
    %41 = arith.maximumf %39, %40 : vector<1x128xf32>
    %cst_15 = arith.constant 9.99999974E-6 : f32
    %42 = vector.broadcast %cst_15 : f32 to vector<1x128xf32>
    %43 = arith.addf %41, %42 : vector<1x128xf32>
    %44 = math.rsqrt %43 : vector<1x128xf32>
    %cst_16 = arith.constant 0.000000e+00 : f32
    %45 = vector.broadcast %cst_16 : f32 to vector<1x128xf32>
    %46 = arith.subf %45, %35 : vector<1x128xf32>
    %47 = arith.mulf %46, %44 : vector<1x128xf32>
    %48 = tpu.concatenate %44, %44 in 1 : vector<1x128xf32>, vector<1x128xf32> -> vector<1x256xf32>
    %49 = tpu.concatenate %47, %47 in 1 : vector<1x128xf32>, vector<1x128xf32> -> vector<1x256xf32>
    %50 = vector.broadcast %48 : vector<1x256xf32> to vector<256x256xf32>
    %51 = arith.mulf %13, %50 : vector<256x256xf32>
    %52 = vector.broadcast %49 : vector<1x256xf32> to vector<256x256xf32>
    %53 = arith.addf %51, %52 : vector<256x256xf32>
    %cst_17 = arith.constant 0.000000e+00 : f32
    %54 = vector.broadcast %cst_17 : f32 to vector<256x256xf32>
    %55 = arith.maximumf %53, %54 : vector<256x256xf32>
    %56 = arith.truncf %55 : vector<256x256xf32> to vector<256x256xbf16>
    %57 = vector.broadcast %48 : vector<1x256xf32> to vector<256x256xf32>
    %58 = arith.mulf %15, %57 : vector<256x256xf32>
    %59 = vector.broadcast %49 : vector<1x256xf32> to vector<256x256xf32>
    %60 = arith.addf %58, %59 : vector<256x256xf32>
    %cst_18 = arith.constant 0.000000e+00 : f32
    %61 = vector.broadcast %cst_18 : f32 to vector<256x256xf32>
    %62 = arith.maximumf %60, %61 : vector<256x256xf32>
    %63 = arith.truncf %62 : vector<256x256xf32> to vector<256x256xbf16>
    %64 = vector.shape_cast %56 : vector<256x256xbf16> to vector<16x16x256xbf16>
    %c0_19 = arith.constant 0 : index
    %c0_20 = arith.constant 0 : index
    %c0_21 = arith.constant 0 : index
    %c0_22 = arith.constant 0 : index
    %c0_23 = arith.constant 0 : index
    %65 = vector.load %arg4[%c0_19, %c0_20, %c0_21, %c0_22, %c0_23] : memref<1x16x2x16x256xbf16, #tpu.memory_space<vmem>>, vector<1x16x1x16x256xbf16>
    %66 = vector.shape_cast %65 : vector<1x16x1x16x256xbf16> to vector<16x16x256xbf16>
    %67 = vector.shape_cast %64 : vector<16x16x256xbf16> to vector<1x16x1x16x256xbf16>
    tpu.vector_store %arg4[%c0_19, %c0_20, %c0_21, %c0_22, %c0_23], %67 {strides = array<i32>} : memref<1x16x2x16x256xbf16, #tpu.memory_space<vmem>>, vector<1x16x1x16x256xbf16>,
    %68 = vector.shape_cast %63 : vector<256x256xbf16> to vector<16x16x256xbf16>
    %c0_24 = arith.constant 0 : index
    %c0_25 = arith.constant 0 : index
    %c1 = arith.constant 1 : index
    %c0_26 = arith.constant 0 : index
    %c0_27 = arith.constant 0 : index
    %69 = vector.load %arg4[%c0_24, %c0_25, %c1, %c0_26, %c0_27] : memref<1x16x2x16x256xbf16, #tpu.memory_space<vmem>>, vector<1x16x1x16x256xbf16>
    %70 = vector.shape_cast %69 : vector<1x16x1x16x256xbf16> to vector<16x16x256xbf16>
    %71 = vector.shape_cast %68 : vector<16x16x256xbf16> to vector<1x16x1x16x256xbf16>
    tpu.vector_store %arg4[%c0_24, %c0_25, %c1, %c0_26, %c0_27], %71 {strides = array<i32>} : memref<1x16x2x16x256xbf16, #tpu.memory_space<vmem>>, vector<1x16x1x16x256xbf16>,
    return
  }
  func.func @transform_0(%arg0: i32) -> (i32, i32, i32, i32) {
    %c0_i32 = arith.constant 0 : i32
    %c0_i32_0 = arith.constant 0 : i32
    %c0_i32_1 = arith.constant 0 : i32
    %c0_i32_2 = arith.constant 0 : i32
    return %arg0, %c0_i32, %c0_i32_0, %c0_i32_1 : i32, i32, i32, i32
  }
  func.func @transform_1(%arg0: i32) -> (i32, i32) {
    %c0_i32 = arith.constant 0 : i32
    %c0_i32_0 = arith.constant 0 : i32
    %c0_i32_1 = arith.constant 0 : i32
    return %c0_i32, %c0_i32_0 : i32, i32
  }
  func.func @transform_2(%arg0: i32) -> (i32, i32) {
    %c0_i32 = arith.constant 0 : i32
    %c0_i32_0 = arith.constant 0 : i32
    %c0_i32_1 = arith.constant 0 : i32
    return %c0_i32, %c0_i32_0 : i32, i32
  }
  func.func @transform_3(%arg0: i32) -> (i32, i32, i32, i32, i32) {
    %c0_i32 = arith.constant 0 : i32
    %c0_i32_0 = arith.constant 0 : i32
    %c0_i32_1 = arith.constant 0 : i32
    %c0_i32_2 = arith.constant 0 : i32
    %c0_i32_3 = arith.constant 0 : i32
    return %arg0, %c0_i32, %c0_i32_0, %c0_i32_1, %c0_i32_2 : i32, i32, i32, i32, i32
  }
}

</mosaic_0001>

<llo_original>
// kernel: upsample_block.1
$region0: #{upsample_block.1}
  #allocation0 [shape = 'u32[]', space=smem, size = 0x4, offset = 0x4, fixed_abs, tag = 'smem constant byte address 0x4 - core index']
  #allocation1 [shape = 'u32[144,128]{1,0:T(1,128)}', space=vmem, size = 0x12000, scoped, tag = 'internal scratch']
  %s0 = inlined_call_operand.vmem [shape: bf16[2,17,17,4], index: 0, kind: input, shape index: {}]
  %s1 = inlined_call_operand.vmem [shape: bf16[8,256], index: 1, kind: input, shape index: {}]
  %s2 = inlined_call_operand.vmem [shape: bf16[16,256], index: 2, kind: input, shape index: {}]
  %s3 = inlined_call_operand.vmem [shape: bf16[2,16,2,16,256], index: 3, kind: output, shape index: {}]
  %s4 = sld [smem:[#allocation0]]
  $region45: #{upsample_block.1} parent=0
    _
  %s6 = ssub.s32 1, %s4
  %s7 = scalar_select 0, %s6, %s4
  loop: start=0, step=1, limit=4
  $region2: #{upsample_block.1} parent=0 // loop_pre_header
    _
  $region3: #{upsample_block.1} parent=0 // loop_header
    %s9 = sphi 0, %s13
    %p10 = scmp.ge.s32.totalorder %s9, 4
    %s19 = sphi 0, %s21
    %s22 = sphi 0, %s19
    %s23 = sphi 0, %s22
    %s39 = sphi 0, %s23
    %s43 = sphi 0, %s43
    %s45 = sphi 0, %s43
    %s46 = sphi 0, %s45
    %s60 = sphi 0, %s46
    %s64 = sphi 0, %s64
    %s66 = sphi 0, %s64
    %s67 = sphi 0, %s66
    %s81 = sphi 0, %s67
    %s87 = sphi 0, %s89
    %s90 = sphi 0, %s87
    %s91 = sphi 0, %s90
    %s107 = sphi 0, %s91
  $region4: #{upsample_block.1} parent=0 // loop_header_branch
    %12 = sbr.rel (%p10) target = $region8
  $region5: #{upsample_block.1} parent=0 // loop_body
    %s14 = ssub.s32 %s9, 1
    %s15 = ssub.s32 %s9, 2
    %s16 = sadd.s32 %s9, 1
    %s17 = ssub.s32 %s9, %s16
    %p18 = scmp.eq.s32.totalorder %s17, 0
    %s20 = sadd.s32 %s19, 1
    %s21 = scalar_select %p18, %s19, %s20
    %p24 = pneg %p18
    %p25 = scmp.eq.s32.totalorder %s9, 1
    %p26 = por %p24, %p25
    %p27 = scmp.ne.s32.totalorder %s19, %s22
    %p28 = scmp.eq.s32.totalorder %s9, 0
    %p29 = por %p27, %p28
    %p30 = scmp.ne.s32.totalorder %s19, %s22
    %p31 = scmp.eq.s32.totalorder %s14, 1
    %p32 = por %p30, %p31
    %p33 = scmp.ne.s32.totalorder %s22, %s23
    %p34 = scmp.eq.s32.totalorder %s14, 0
    %p35 = por %p33, %p34
    %p36 = scmp.ne.s32.totalorder %s22, %s23
    %p37 = scmp.eq.s32.totalorder %s15, 1
    %p38 = por %p36, %p37
    %p40 = scmp.ne.s32.totalorder %s23, %s39
    %p41 = scmp.eq.s32.totalorder %s15, 0
    %p42 = por %p40, %p41
    %s44 = sadd.s32 %s43, 1
    %p47 = scmp.eq.s32.totalorder %s9, 1
    %p48 = scmp.ne.s32.totalorder %s43, %s45
    %p49 = scmp.eq.s32.totalorder %s9, 0
    %p50 = por %p48, %p49
    %p51 = scmp.ne.s32.totalorder %s43, %s45
    %p52 = scmp.eq.s32.totalorder %s14, 1
    %p53 = por %p51, %p52
    %p54 = scmp.ne.s32.totalorder %s45, %s46
    %p55 = scmp.eq.s32.totalorder %s14, 0
    %p56 = por %p54, %p55
    %p57 = scmp.ne.s32.totalorder %s45, %s46
    %p58 = scmp.eq.s32.totalorder %s15, 1
    %p59 = por %p57, %p58
    %p61 = scmp.ne.s32.totalorder %s46, %s60
    %p62 = scmp.eq.s32.totalorder %s15, 0
    %p63 = por %p61, %p62
    %s65 = sadd.s32 %s64, 1
    %p68 = scmp.eq.s32.totalorder %s9, 1
    %p69 = scmp.ne.s32.totalorder %s64, %s66
    %p70 = scmp.eq.s32.totalorder %s9, 0
    %p71 = por %p69, %p70
    %p72 = scmp.ne.s32.totalorder %s64, %s66
    %p73 = scmp.eq.s32.totalorder %s14, 1
    %p74 = por %p72, %p73
    %p75 = scmp.ne.s32.totalorder %s66, %s67
    %p76 = scmp.eq.s32.totalorder %s14, 0
    %p77 = por %p75, %p76
    %p78 = scmp.ne.s32.totalorder %s66, %s67
    %p79 = scmp.eq.s32.totalorder %s15, 1
    %p80 = por %p78, %p79
    %p82 = scmp.ne.s32.totalorder %s67, %s81
    %p83 = scmp.eq.s32.totalorder %s15, 0
    %p84 = por %p82, %p83
    %s85 = ssub.s32 %s9, %s16
    %p86 = scmp.eq.s32.totalorder %s85, 0
    %s88 = sadd.s32 %s87, 1
    %s89 = scalar_select %p86, %s87, %s88
    %p92 = pneg %p86
    %p93 = scmp.eq.s32.totalorder %s9, 1
    %p94 = por %p92, %p93
    %p95 = scmp.ne.s32.totalorder %s87, %s90
    %p96 = scmp.eq.s32.totalorder %s9, 0
    %p97 = por %p95, %p96
    %p98 = scmp.ne.s32.totalorder %s87, %s90
    %p99 = scmp.eq.s32.totalorder %s14, 1
    %p100 = por %p98, %p99
    %p101 = scmp.ne.s32.totalorder %s90, %s91
    %p102 = scmp.eq.s32.totalorder %s14, 0
    %p103 = por %p101, %p102
    %p104 = scmp.ne.s32.totalorder %s90, %s91
    %p105 = scmp.eq.s32.totalorder %s15, 1
    %p106 = por %p104, %p105
    %p108 = scmp.ne.s32.totalorder %s91, %s107
    %p109 = scmp.eq.s32.totalorder %s15, 0
    %p110 = por %p108, %p109
    %p111 = scmp.le.s32.totalorder 1, %s9
    %p112 = scmp.lt.s32.totalorder %s9, 3
    %p113 = pnand %p111, %p112
    %p114 = pneg %p113
    // Predicated region
    $region9: #{upsample_block.1} parent=5 // pred_check
      _
    $region10: #{upsample_block.1} parent=5 // pred_check_branch
      %116 = sbr.rel (%p113) target = $region12
    $region11: #{upsample_block.1} parent=5 // pred_region
      %s117 = ssub.s32 %s9, 1
      // Predicated region
      $region13: #{upsample_block.1} parent=11 // pred_check
        %p118 = pneg %p56
      $region14: #{upsample_block.1} parent=11 // pred_check_branch
        %120 = sbr.rel (%p118) target = $region16
      $region15: #{upsample_block.1} parent=11 // pred_region
        _
      $region16: #{upsample_block.1} parent=11 // pred_fallthru
        _
      // Predicated region
      $region17: #{upsample_block.1} parent=11 // pred_check
        %p121 = pneg %p77
      $region18: #{upsample_block.1} parent=11 // pred_check_branch
        %123 = sbr.rel (%p121) target = $region20
      $region19: #{upsample_block.1} parent=11 // pred_region
        _
      $region20: #{upsample_block.1} parent=11 // pred_fallthru
        _
    $region12: #{upsample_block.1} parent=5 // pred_fallthru
      _
    %p124 = scmp.lt.s32.totalorder %s9, 2
    // Predicated region
    $region21: #{upsample_block.1} parent=5 // pred_check
      %p125 = pneg %p124
    $region22: #{upsample_block.1} parent=5 // pred_check_branch
      %127 = sbr.rel (%p125) target = $region24
    $region23: #{upsample_block.1} parent=5 // pred_region
      // Predicated region
      $region25: #{upsample_block.1} parent=23 // pred_check
        %p128 = pneg %p29
      $region26: #{upsample_block.1} parent=23 // pred_check_branch
        %130 = sbr.rel (%p128) target = $region28
      $region27: #{upsample_block.1} parent=23 // pred_region
        %p131 = scmp.lt.s32.totalorder %s9, 1
        %s132 = scalar_select %p131, %s9, 1
        %s133 = smul.addr %s132, 51
        %s134 = smul.addr %s133, 4
        %s135 = scalar_lea.vmem %s0, %s134
      $region28: #{upsample_block.1} parent=23 // pred_fallthru
        _
    $region24: #{upsample_block.1} parent=5 // pred_fallthru
      _
    %p136 = scmp.le.s32.totalorder 1, %s9
    %p137 = scmp.lt.s32.totalorder %s9, 3
    %p138 = pnand %p136, %p137
    %p139 = pneg %p138
    // Predicated region
    $region29: #{upsample_block.1} parent=5 // pred_check
      _
    $region30: #{upsample_block.1} parent=5 // pred_check_branch
      %141 = sbr.rel (%p138) target = $region32
    $region31: #{upsample_block.1} parent=5 // pred_region
      %s142 = ssub.s32 %s9, 1
      %p143 = scmp.lt.s32.totalorder %s14, 1
      %s144 = scalar_select %p143, %s14, 1
      %s145 = smul.addr %s144, 51
      %s146 = smul.addr %s145, 4
      %s147 = scalar_lea.vmem %s0, %s146
      %p148 = pneg %p35
      %p149 = pneg %p32
      %p150 = pneg %p56
      %p151 = pneg %p53
      %p152 = pneg %p77
      %p153 = pneg %p74
      %p154 = pneg %p103
      %p155 = pneg %p100
      %p156 = scmp.lt.s32.totalorder %s14, 1
      %s157 = scalar_select %p156, %s14, 1
      %s158 = smul.addr %s157, 128
      %s159 = smul.addr %s158, 4
      %s160 = scalar_lea.vmem %s3, %s159
      %p161 = scmp.lt.s32.totalorder %s14, 1
      %s162 = scalar_select %p161, %s14, 1
      %s163 = smul.addr %s162, 51
      %s164 = smul.addr %s163, 4
      %s165 = scalar_lea.vmem %s0, %s164
      %p166 = scmp.lt.s32.totalorder %s14, 1
      %s167 = scalar_select %p166, %s14, 1
      %s168 = smul.addr %s167, 128
      %s169 = smul.addr %s168, 4
      %s170 = scalar_lea.vmem %s3, %s169
      %v172 = vld [vmem:[%s165] sm:$0xf]
      %v173 = vld [vmem:[%s165 + $0x4] sm:$0xf]
      %v174 = vld [vmem:[%s165 + $0x8] sm:$0x1]
      %v175 = vld [vmem:[%s165 + $0xc] sm:$0xf]
      %v176 = vld [vmem:[%s165 + $0x10] sm:$0xf]
      %v177 = vld [vmem:[%s165 + $0x14] sm:$0x1]
      %v178 = vld [vmem:[%s165 + $0x18] sm:$0xf]
      %v179 = vld [vmem:[%s165 + $0x1c] sm:$0xf]
      %v180 = vld [vmem:[%s165 + $0x20] sm:$0x1]
      %v181 = vld [vmem:[%s165 + $0x24] sm:$0xf]
      %v182 = vld [vmem:[%s165 + $0x28] sm:$0xf]
      %v183 = vld [vmem:[%s165 + $0x2c] sm:$0x1]
      %v184 = vld [vmem:[%s165 + $0x30] sm:$0xf]
      %v185 = vld [vmem:[%s165 + $0x34] sm:$0xf]
      %v186 = vld [vmem:[%s165 + $0x38] sm:$0x1]
      %v187 = vld [vmem:[%s165 + $0x3c] sm:$0xf]
      %v188 = vld [vmem:[%s165 + $0x40] sm:$0xf]
      %v189 = vld [vmem:[%s165 + $0x44] sm:$0x1]
      %v190 = vld [vmem:[%s165 + $0x48] sm:$0xf]
      %v191 = vld [vmem:[%s165 + $0x4c] sm:$0xf]
      %v192 = vld [vmem:[%s165 + $0x50] sm:$0x1]
      %v193 = vld [vmem:[%s165 + $0x54] sm:$0xf]
      %v194 = vld [vmem:[%s165 + $0x58] sm:$0xf]
      %v195 = vld [vmem:[%s165 + $0x5c] sm:$0x1]
      %v196 = vld [vmem:[%s165 + $0x60] sm:$0xf]
      %v197 = vld [vmem:[%s165 + $0x64] sm:$0xf]
      %v198 = vld [vmem:[%s165 + $0x68] sm:$0x1]
      %v199 = vld [vmem:[%s165 + $0x6c] sm:$0xf]
      %v200 = vld [vmem:[%s165 + $0x70] sm:$0xf]
      %v201 = vld [vmem:[%s165 + $0x74] sm:$0x1]
      %v202 = vld [vmem:[%s165 + $0x78] sm:$0xf]
      %v203 = vld [vmem:[%s165 + $0x7c] sm:$0xf]
      %v204 = vld [vmem:[%s165 + $0x80] sm:$0x1]
      %v205 = vld [vmem:[%s165 + $0x84] sm:$0xf]
      %v206 = vld [vmem:[%s165 + $0x88] sm:$0xf]
      %v207 = vld [vmem:[%s165 + $0x8c] sm:$0x1]
      %v208 = vld [vmem:[%s165 + $0x90] sm:$0xf]
      %v209 = vld [vmem:[%s165 + $0x94] sm:$0xf]
      %v210 = vld [vmem:[%s165 + $0x98] sm:$0x1]
      %v211 = vld [vmem:[%s165 + $0x9c] sm:$0xf]
      %v212 = vld [vmem:[%s165 + $0xa0] sm:$0xf]
      %v213 = vld [vmem:[%s165 + $0xa4] sm:$0x1]
      %v214 = vld [vmem:[%s165 + $0xa8] sm:$0xf]
      %v215 = vld [vmem:[%s165 + $0xac] sm:$0xf]
      %v216 = vld [vmem:[%s165 + $0xb0] sm:$0x1]
      %v217 = vld [vmem:[%s165 + $0xb4] sm:$0xf]
      %v218 = vld [vmem:[%s165 + $0xb8] sm:$0xf]
      %v219 = vld [vmem:[%s165 + $0xbc] sm:$0x1]
      %v220 = vld [vmem:[%s165 + $0xc0] sm:$0xf]
      %v221 = vld [vmem:[%s165 + $0xc4] sm:$0xf]
      %v222 = vld [vmem:[%s165 + $0xc8] sm:$0x1]
      %vm223 = vsmask.f32 3328
      %vm224 = vsmask.f32 7440
      %vm225 = vmor %vm223, %vm224
      %v227 = vshrl.u32 %v172, 16
      %v229 = vrot.slane %v227, 4
      %v230 = vshll.u32 %v172, 16
      %v232 = vrot.slane %v230, 5
      %v233 = vor.u32 %v229, %v232
      %v234 = vrot.slane %v233, 4
      %v236 = vshll.u32 %v173, 16
      %v238 = vrot.slane %v236, 5
      %v239 = vsel %vm225, %v234, %v238
      %v240 = vshrl.u32 %v173, 16
      %v242 = vrot.slane %v240, 4
      %v243 = vor.u32 %v242, %v238
      %v244 = vrot.slane %v243, 4
      %v246 = vshll.u32 %v174, 16
      %v248 = vrot.slane %v246, 5
      %v249 = vsel %vm225, %v244, %v248
      %v251 = vshrl.u32 %v175, 16
      %v253 = vrot.slane %v251, 4
      %v254 = vshll.u32 %v175, 16
      %v256 = vrot.slane %v254, 5
      %v257 = vor.u32 %v253, %v256
      %v258 = vrot.slane %v257, 4
      %v260 = vshll.u32 %v176, 16
      %v262 = vrot.slane %v260, 5
      %v263 = vsel %vm225, %v258, %v262
      %v264 = vshrl.u32 %v176, 16
      %v266 = vrot.slane %v264, 4
      %v267 = vor.u32 %v266, %v262
      %v268 = vrot.slane %v267, 4
      %v270 = vshll.u32 %v177, 16
      %v272 = vrot.slane %v270, 5
      %v273 = vsel %vm225, %v268, %v272
      %v275 = vshrl.u32 %v178, 16
      %v277 = vrot.slane %v275, 4
      %v278 = vshll.u32 %v178, 16
      %v280 = vrot.slane %v278, 5
      %v281 = vor.u32 %v277, %v280
      %v282 = vrot.slane %v281, 4
      %v284 = vshll.u32 %v179, 16
      %v286 = vrot.slane %v284, 5
      %v287 = vsel %vm225, %v282, %v286
      %v288 = vshrl.u32 %v179, 16
      %v290 = vrot.slane %v288, 4
      %v291 = vor.u32 %v290, %v286
      %v292 = vrot.slane %v291, 4
      %v294 = vshll.u32 %v180, 16
      %v296 = vrot.slane %v294, 5
      %v297 = vsel %vm225, %v292, %v296
      %v299 = vshrl.u32 %v181, 16
      %v301 = vrot.slane %v299, 4
      %v302 = vshll.u32 %v181, 16
      %v304 = vrot.slane %v302, 5
      %v305 = vor.u32 %v301, %v304
      %v306 = vrot.slane %v305, 4
      %v308 = vshll.u32 %v182, 16
      %v310 = vrot.slane %v308, 5
      %v311 = vsel %vm225, %v306, %v310
      %v312 = vshrl.u32 %v182, 16
      %v314 = vrot.slane %v312, 4
      %v315 = vor.u32 %v314, %v310
      %v316 = vrot.slane %v315, 4
      %v318 = vshll.u32 %v183, 16
      %v320 = vrot.slane %v318, 5
      %v321 = vsel %vm225, %v316, %v320
      %v323 = vshrl.u32 %v184, 16
      %v325 = vrot.slane %v323, 4
      %v326 = vshll.u32 %v184, 16
      %v328 = vrot.slane %v326, 5
      %v329 = vor.u32 %v325, %v328
      %v330 = vrot.slane %v329, 4
      %v332 = vshll.u32 %v185, 16
      %v334 = vrot.slane %v332, 5
      %v335 = vsel %vm225, %v330, %v334
      %v336 = vshrl.u32 %v185, 16
      %v338 = vrot.slane %v336, 4
      %v339 = vor.u32 %v338, %v334
      %v340 = vrot.slane %v339, 4
      %v342 = vshll.u32 %v186, 16
      %v344 = vrot.slane %v342, 5
      %v345 = vsel %vm225, %v340, %v344
      %v347 = vshrl.u32 %v187, 16
      %v349 = vrot.slane %v347, 4
      %v350 = vshll.u32 %v187, 16
      %v352 = vrot.slane %v350, 5
      %v353 = vor.u32 %v349, %v352
      %v354 = vrot.slane %v353, 4
      %v356 = vshll.u32 %v188, 16
      %v358 = vrot.slane %v356, 5
      %v359 = vsel %vm225, %v354, %v358
      %v360 = vshrl.u32 %v188, 16
      %v362 = vrot.slane %v360, 4
      %v363 = vor.u32 %v362, %v358
      %v364 = vrot.slane %v363, 4
      %v366 = vshll.u32 %v189, 16
      %v368 = vrot.slane %v366, 5
      %v369 = vsel %vm225, %v364, %v368
      %v371 = vshrl.u32 %v190, 16
      %v373 = vrot.slane %v371, 4
      %v374 = vshll.u32 %v190, 16
      %v376 = vrot.slane %v374, 5
      %v377 = vor.u32 %v373, %v376
      %v378 = vrot.slane %v377, 4
      %v380 = vshll.u32 %v191, 16
      %v382 = vrot.slane %v380, 5
      %v383 = vsel %vm225, %v378, %v382
      %v384 = vshrl.u32 %v191, 16
      %v386 = vrot.slane %v384, 4
      %v387 = vor.u32 %v386, %v382
      %v388 = vrot.slane %v387, 4
      %v390 = vshll.u32 %v192, 16
      %v392 = vrot.slane %v390, 5
      %v393 = vsel %vm225, %v388, %v392
      %v395 = vshrl.u32 %v193, 16
      %v397 = vrot.slane %v395, 4
      %v398 = vshll.u32 %v193, 16
      %v400 = vrot.slane %v398, 5
      %v401 = vor.u32 %v397, %v400
      %v402 = vrot.slane %v401, 4
      %v404 = vshll.u32 %v194, 16
      %v406 = vrot.slane %v404, 5
      %v407 = vsel %vm225, %v402, %v406
      %v408 = vshrl.u32 %v194, 16
      %v410 = vrot.slane %v408, 4
      %v411 = vor.u32 %v410, %v406
      %v412 = vrot.slane %v411, 4
      %v414 = vshll.u32 %v195, 16
      %v416 = vrot.slane %v414, 5
      %v417 = vsel %vm225, %v412, %v416
      %v419 = vshrl.u32 %v196, 16
      %v421 = vrot.slane %v419, 4
      %v422 = vshll.u32 %v196, 16
      %v424 = vrot.slane %v422, 5
      %v425 = vor.u32 %v421, %v424
      %v426 = vrot.slane %v425, 4
      %v428 = vshll.u32 %v197, 16
      %v430 = vrot.slane %v428, 5
      %v431 = vsel %vm225, %v426, %v430
      %v432 = vshrl.u32 %v197, 16
      %v434 = vrot.slane %v432, 4
      %v435 = vor.u32 %v434, %v430
      %v436 = vrot.slane %v435, 4
      %v438 = vshll.u32 %v198, 16
      %v440 = vrot.slane %v438, 5
      %v441 = vsel %vm225, %v436, %v440
      %v443 = vshrl.u32 %v199, 16
      %v445 = vrot.slane %v443, 4
      %v446 = vshll.u32 %v199, 16
      %v448 = vrot.slane %v446, 5
      %v449 = vor.u32 %v445, %v448
      %v450 = vrot.slane %v449, 4
      %v452 = vshll.u32 %v200, 16
      %v454 = vrot.slane %v452, 5
      %v455 = vsel %vm225, %v450, %v454
      %v456 = vshrl.u32 %v200, 16
      %v458 = vrot.slane %v456, 4
      %v459 = vor.u32 %v458, %v454
      %v460 = vrot.slane %v459, 4
      %v462 = vshll.u32 %v201, 16
      %v464 = vrot.slane %v462, 5
      %v465 = vsel %vm225, %v460, %v464
      %v467 = vshrl.u32 %v202, 16
      %v469 = vrot.slane %v467, 4
      %v470 = vshll.u32 %v202, 16
      %v472 = vrot.slane %v470, 5
      %v473 = vor.u32 %v469, %v472
      %v474 = vrot.slane %v473, 4
      %v476 = vshll.u32 %v203, 16
      %v478 = vrot.slane %v476, 5
      %v479 = vsel %vm225, %v474, %v478
      %v480 = vshrl.u32 %v203, 16
      %v482 = vrot.slane %v480, 4
      %v483 = vor.u32 %v482, %v478
      %v484 = vrot.slane %v483, 4
      %v486 = vshll.u32 %v204, 16
      %v488 = vrot.slane %v486, 5
      %v489 = vsel %vm225, %v484, %v488
      %v491 = vshrl.u32 %v205, 16
      %v493 = vrot.slane %v491, 4
      %v494 = vshll.u32 %v205, 16
      %v496 = vrot.slane %v494, 5
      %v497 = vor.u32 %v493, %v496
      %v498 = vrot.slane %v497, 4
      %v500 = vshll.u32 %v206, 16
      %v502 = vrot.slane %v500, 5
      %v503 = vsel %vm225, %v498, %v502
      %v504 = vshrl.u32 %v206, 16
      %v506 = vrot.slane %v504, 4
      %v507 = vor.u32 %v506, %v502
      %v508 = vrot.slane %v507, 4
      %v510 = vshll.u32 %v207, 16
      %v512 = vrot.slane %v510, 5
      %v513 = vsel %vm225, %v508, %v512
      %v515 = vshrl.u32 %v208, 16
      %v517 = vrot.slane %v515, 4
      %v518 = vshll.u32 %v208, 16
      %v520 = vrot.slane %v518, 5
      %v521 = vor.u32 %v517, %v520
      %v522 = vrot.slane %v521, 4
      %v524 = vshll.u32 %v209, 16
      %v526 = vrot.slane %v524, 5
      %v527 = vsel %vm225, %v522, %v526
      %v528 = vshrl.u32 %v209, 16
      %v530 = vrot.slane %v528, 4
      %v531 = vor.u32 %v530, %v526
      %v532 = vrot.slane %v531, 4
      %v534 = vshll.u32 %v210, 16
      %v536 = vrot.slane %v534, 5
      %v537 = vsel %vm225, %v532, %v536
      %v539 = vshrl.u32 %v211, 16
      %v541 = vrot.slane %v539, 4
      %v542 = vshll.u32 %v211, 16
      %v544 = vrot.slane %v542, 5
      %v545 = vor.u32 %v541, %v544
      %v546 = vrot.slane %v545, 4
      %v548 = vshll.u32 %v212, 16
      %v550 = vrot.slane %v548, 5
      %v551 = vsel %vm225, %v546, %v550
      %v552 = vshrl.u32 %v212, 16
      %v554 = vrot.slane %v552, 4
      %v555 = vor.u32 %v554, %v550
      %v556 = vrot.slane %v555, 4
      %v558 = vshll.u32 %v213, 16
      %v560 = vrot.slane %v558, 5
      %v561 = vsel %vm225, %v556, %v560
      %v563 = vshrl.u32 %v214, 16
      %v565 = vrot.slane %v563, 4
      %v566 = vshll.u32 %v214, 16
      %v568 = vrot.slane %v566, 5
      %v569 = vor.u32 %v565, %v568
      %v570 = vrot.slane %v569, 4
      %v572 = vshll.u32 %v215, 16
      %v574 = vrot.slane %v572, 5
      %v575 = vsel %vm225, %v570, %v574
      %v576 = vshrl.u32 %v215, 16
      %v578 = vrot.slane %v576, 4
      %v579 = vor.u32 %v578, %v574
      %v580 = vrot.slane %v579, 4
      %v582 = vshll.u32 %v216, 16
      %v584 = vrot.slane %v582, 5
      %v585 = vsel %vm225, %v580, %v584
      %v587 = vshrl.u32 %v217, 16
      %v589 = vrot.slane %v587, 4
      %v590 = vshll.u32 %v217, 16
      %v592 = vrot.slane %v590, 5
      %v593 = vor.u32 %v589, %v592
      %v594 = vrot.slane %v593, 4
      %v596 = vshll.u32 %v218, 16
      %v598 = vrot.slane %v596, 5
      %v599 = vsel %vm225, %v594, %v598
      %v600 = vshrl.u32 %v218, 16
      %v602 = vrot.slane %v600, 4
      %v603 = vor.u32 %v602, %v598
      %v604 = vrot.slane %v603, 4
      %v606 = vshll.u32 %v219, 16
      %v608 = vrot.slane %v606, 5
      %v609 = vsel %vm225, %v604, %v608
      %v611 = vshrl.u32 %v220, 16
      %v613 = vrot.slane %v611, 4
      %v614 = vshll.u32 %v220, 16
      %v616 = vrot.slane %v614, 5
      %v617 = vor.u32 %v613, %v616
      %v618 = vrot.slane %v617, 4
      %v620 = vshll.u32 %v221, 16
      %v622 = vrot.slane %v620, 5
      %v623 = vsel %vm225, %v618, %v622
      %v624 = vshrl.u32 %v221, 16
      %v626 = vrot.slane %v624, 4
      %v627 = vor.u32 %v626, %v622
      %v628 = vrot.slane %v627, 4
      %v630 = vshll.u32 %v222, 16
      %v632 = vrot.slane %v630, 5
      %v633 = vsel %vm225, %v628, %v632
      %v666 = vunpack.c.l.b16 %v172
      %v667 = vunpack.c.l.b16 %v173
      %v668 = vunpack.c.l.b16 %v175
      %v669 = vunpack.c.l.b16 %v176
      %v670 = vunpack.c.l.b16 %v178
      %v671 = vunpack.c.l.b16 %v179
      %v672 = vunpack.c.l.b16 %v181
      %v673 = vunpack.c.l.b16 %v182
      %v674 = vunpack.c.l.b16 %v184
      %v675 = vunpack.c.l.b16 %v185
      %v676 = vunpack.c.l.b16 %v187
      %v677 = vunpack.c.l.b16 %v188
      %v678 = vunpack.c.l.b16 %v190
      %v679 = vunpack.c.l.b16 %v191
      %v680 = vunpack.c.l.b16 %v193
      %v681 = vunpack.c.l.b16 %v194
      %v682 = vunpack.c.l.b16 %v196
      %v683 = vunpack.c.l.b16 %v197
      %v684 = vunpack.c.l.b16 %v199
      %v685 = vunpack.c.l.b16 %v200
      %v686 = vunpack.c.l.b16 %v202
      %v687 = vunpack.c.l.b16 %v203
      %v688 = vunpack.c.l.b16 %v205
      %v689 = vunpack.c.l.b16 %v206
      %v690 = vunpack.c.l.b16 %v208
      %v691 = vunpack.c.l.b16 %v209
      %v692 = vunpack.c.l.b16 %v211
      %v693 = vunpack.c.l.b16 %v212
      %v694 = vunpack.c.l.b16 %v214
      %v695 = vunpack.c.l.b16 %v215
      %v696 = vunpack.c.l.b16 %v217
      %v697 = vunpack.c.l.b16 %v218
      %v698 = vpack.c.b16 %v667, %v666
      %v699 = vpack.c.b16 %v669, %v668
      %v700 = vpack.c.b16 %v671, %v670
      %v701 = vpack.c.b16 %v673, %v672
      %v702 = vpack.c.b16 %v675, %v674
      %v703 = vpack.c.b16 %v677, %v676
      %v704 = vpack.c.b16 %v679, %v678
      %v705 = vpack.c.b16 %v681, %v680
      %v706 = vpack.c.b16 %v683, %v682
      %v707 = vpack.c.b16 %v685, %v684
      %v708 = vpack.c.b16 %v687, %v686
      %v709 = vpack.c.b16 %v689, %v688
      %v710 = vpack.c.b16 %v691, %v690
      %v711 = vpack.c.b16 %v693, %v692
      %v712 = vpack.c.b16 %v695, %v694
      %v713 = vpack.c.b16 %v697, %v696
      %v714 = vunpack.c.l.b16 %v239
      %v715 = vunpack.c.l.b16 %v249
      %v716 = vunpack.c.l.b16 %v263
      %v717 = vunpack.c.l.b16 %v273
      %v718 = vunpack.c.l.b16 %v287
      %v719 = vunpack.c.l.b16 %v297
      %v720 = vunpack.c.l.b16 %v311
      %v721 = vunpack.c.l.b16 %v321
      %v722 = vunpack.c.l.b16 %v335
      %v723 = vunpack.c.l.b16 %v345
      %v724 = vunpack.c.l.b16 %v359
      %v725 = vunpack.c.l.b16 %v369
      %v726 = vunpack.c.l.b16 %v383
      %v727 = vunpack.c.l.b16 %v393
      %v728 = vunpack.c.l.b16 %v407
      %v729 = vunpack.c.l.b16 %v417
      %v730 = vunpack.c.l.b16 %v431
      %v731 = vunpack.c.l.b16 %v441
      %v732 = vunpack.c.l.b16 %v455
      %v733 = vunpack.c.l.b16 %v465
      %v734 = vunpack.c.l.b16 %v479
      %v735 = vunpack.c.l.b16 %v489
      %v736 = vunpack.c.l.b16 %v503
      %v737 = vunpack.c.l.b16 %v513
      %v738 = vunpack.c.l.b16 %v527
      %v739 = vunpack.c.l.b16 %v537
      %v740 = vunpack.c.l.b16 %v551
      %v741 = vunpack.c.l.b16 %v561
      %v742 = vunpack.c.l.b16 %v575
      %v743 = vunpack.c.l.b16 %v585
      %v744 = vunpack.c.l.b16 %v599
      %v745 = vunpack.c.l.b16 %v609
      %v746 = vpack.c.b16 %v715, %v714
      %v747 = vpack.c.b16 %v717, %v716
      %v748 = vpack.c.b16 %v719, %v718
      %v749 = vpack.c.b16 %v721, %v720
      %v750 = vpack.c.b16 %v723, %v722
      %v751 = vpack.c.b16 %v725, %v724
      %v752 = vpack.c.b16 %v727, %v726
      %v753 = vpack.c.b16 %v729, %v728
      %v754 = vpack.c.b16 %v731, %v730
      %v755 = vpack.c.b16 %v733, %v732
      %v756 = vpack.c.b16 %v735, %v734
      %v757 = vpack.c.b16 %v737, %v736
      %v758 = vpack.c.b16 %v739, %v738
      %v759 = vpack.c.b16 %v741, %v740
      %v760 = vpack.c.b16 %v743, %v742
      %v761 = vpack.c.b16 %v745, %v744
      %762 = vrot.lane.b32.xlu0 %v746, 4
      %v763 = vpop.permute.xlu0 %762
      %764 = vrot.lane.b32.xlu0 %v747, 4
      %v765 = vpop.permute.xlu0 %764
      %766 = vrot.lane.b32.xlu0 %v748, 4
      %v767 = vpop.permute.xlu0 %766
      %768 = vrot.lane.b32.xlu0 %v749, 4
      %v769 = vpop.permute.xlu0 %768
      %770 = vrot.lane.b32.xlu0 %v750, 4
      %v771 = vpop.permute.xlu0 %770
      %772 = vrot.lane.b32.xlu0 %v751, 4
      %v773 = vpop.permute.xlu0 %772
      %774 = vrot.lane.b32.xlu0 %v752, 4
      %v775 = vpop.permute.xlu0 %774
      %776 = vrot.lane.b32.xlu0 %v753, 4
      %v777 = vpop.permute.xlu0 %776
      %778 = vrot.lane.b32.xlu0 %v754, 4
      %v779 = vpop.permute.xlu0 %778
      %780 = vrot.lane.b32.xlu0 %v755, 4
      %v781 = vpop.permute.xlu0 %780
      %782 = vrot.lane.b32.xlu0 %v756, 4
      %v783 = vpop.permute.xlu0 %782
      %784 = vrot.lane.b32.xlu0 %v757, 4
      %v785 = vpop.permute.xlu0 %784
      %786 = vrot.lane.b32.xlu0 %v758, 4
      %v787 = vpop.permute.xlu0 %786
      %788 = vrot.lane.b32.xlu0 %v759, 4
      %v789 = vpop.permute.xlu0 %788
      %790 = vrot.lane.b32.xlu0 %v760, 4
      %v791 = vpop.permute.xlu0 %790
      %792 = vrot.lane.b32.xlu0 %v761, 4
      %v793 = vpop.permute.xlu0 %792
      %v796 = vunpack.c.l.b16 %v220
      %v797 = vunpack.c.l.b16 %v221
      %v798 = vpack.c.b16 %v797, %v796
      %799 = vrot.lane.b32.xlu0 %v699, 8
      %v800 = vpop.permute.xlu0 %799
      %801 = vrot.lane.b32.xlu0 %v700, 8
      %v802 = vpop.permute.xlu0 %801
      %803 = vrot.lane.b32.xlu0 %v701, 8
      %v804 = vpop.permute.xlu0 %803
      %805 = vrot.lane.b32.xlu0 %v702, 8
      %v806 = vpop.permute.xlu0 %805
      %807 = vrot.lane.b32.xlu0 %v703, 8
      %v808 = vpop.permute.xlu0 %807
      %809 = vrot.lane.b32.xlu0 %v704, 8
      %v810 = vpop.permute.xlu0 %809
      %811 = vrot.lane.b32.xlu0 %v705, 8
      %v812 = vpop.permute.xlu0 %811
      %813 = vrot.lane.b32.xlu0 %v706, 8
      %v814 = vpop.permute.xlu0 %813
      %815 = vrot.lane.b32.xlu0 %v707, 8
      %v816 = vpop.permute.xlu0 %815
      %817 = vrot.lane.b32.xlu0 %v708, 8
      %v818 = vpop.permute.xlu0 %817
      %819 = vrot.lane.b32.xlu0 %v709, 8
      %v820 = vpop.permute.xlu0 %819
      %821 = vrot.lane.b32.xlu0 %v710, 8
      %v822 = vpop.permute.xlu0 %821
      %823 = vrot.lane.b32.xlu0 %v711, 8
      %v824 = vpop.permute.xlu0 %823
      %825 = vrot.lane.b32.xlu0 %v712, 8
      %v826 = vpop.permute.xlu0 %825
      %827 = vrot.lane.b32.xlu0 %v713, 8
      %v828 = vpop.permute.xlu0 %827
      %829 = vrot.lane.b32.xlu0 %v798, 8
      %v830 = vpop.permute.xlu0 %829
      %v831 = vunpack.c.l.b16 %v623
      %v832 = vunpack.c.l.b16 %v633
      %v833 = vpack.c.b16 %v832, %v831
      %834 = vrot.lane.b32.xlu0 %v747, 12
      %v835 = vpop.permute.xlu0 %834
      %836 = vrot.lane.b32.xlu0 %v748, 12
      %v837 = vpop.permute.xlu0 %836
      %838 = vrot.lane.b32.xlu0 %v749, 12
      %v839 = vpop.permute.xlu0 %838
      %840 = vrot.lane.b32.xlu0 %v750, 12
      %v841 = vpop.permute.xlu0 %840
      %842 = vrot.lane.b32.xlu0 %v751, 12
      %v843 = vpop.permute.xlu0 %842
      %844 = vrot.lane.b32.xlu0 %v752, 12
      %v845 = vpop.permute.xlu0 %844
      %846 = vrot.lane.b32.xlu0 %v753, 12
      %v847 = vpop.permute.xlu0 %846
      %848 = vrot.lane.b32.xlu0 %v754, 12
      %v849 = vpop.permute.xlu0 %848
      %850 = vrot.lane.b32.xlu0 %v755, 12
      %v851 = vpop.permute.xlu0 %850
      %852 = vrot.lane.b32.xlu0 %v756, 12
      %v853 = vpop.permute.xlu0 %852
      %854 = vrot.lane.b32.xlu0 %v757, 12
      %v855 = vpop.permute.xlu0 %854
      %856 = vrot.lane.b32.xlu0 %v758, 12
      %v857 = vpop.permute.xlu0 %856
      %858 = vrot.lane.b32.xlu0 %v759, 12
      %v859 = vpop.permute.xlu0 %858
      %860 = vrot.lane.b32.xlu0 %v760, 12
      %v861 = vpop.permute.xlu0 %860
      %862 = vrot.lane.b32.xlu0 %v761, 12
      %v863 = vpop.permute.xlu0 %862
      %864 = vrot.lane.b32.xlu0 %v833, 12
      %v865 = vpop.permute.xlu0 %864
      %vm866 = vcmask 31744
      %v869 = vsel %vm866, %v698, %v763
      %v872 = vsel %vm866, %v699, %v765
      %v875 = vsel %vm866, %v700, %v767
      %v878 = vsel %vm866, %v701, %v769
      %v881 = vsel %vm866, %v702, %v771
      %v884 = vsel %vm866, %v703, %v773
      %v887 = vsel %vm866, %v704, %v775
      %v890 = vsel %vm866, %v705, %v777
      %v893 = vsel %vm866, %v706, %v779
      %v896 = vsel %vm866, %v707, %v781
      %v899 = vsel %vm866, %v708, %v783
      %v902 = vsel %vm866, %v709, %v785
      %v905 = vsel %vm866, %v710, %v787
      %v908 = vsel %vm866, %v711, %v789
      %v911 = vsel %vm866, %v712, %v791
      %v914 = vsel %vm866, %v713, %v793
      %vm915 = vcmask 64512
      %v917 = vsel %vm915, %v869, %v800
      %v919 = vsel %vm915, %v872, %v802
      %v921 = vsel %vm915, %v875, %v804
      %v923 = vsel %vm915, %v878, %v806
      %v925 = vsel %vm915, %v881, %v808
      %v927 = vsel %vm915, %v884, %v810
      %v929 = vsel %vm915, %v887, %v812
      %v931 = vsel %vm915, %v890, %v814
      %v933 = vsel %vm915, %v893, %v816
      %v935 = vsel %vm915, %v896, %v818
      %v937 = vsel %vm915, %v899, %v820
      %v939 = vsel %vm915, %v902, %v822
      %v941 = vsel %vm915, %v905, %v824
      %v943 = vsel %vm915, %v908, %v826
      %v945 = vsel %vm915, %v911, %v828
      %v947 = vsel %vm915, %v914, %v830
      %vm948 = vcmask 97280
      %v950 = vsel %vm948, %v917, %v835
      %v952 = vsel %vm948, %v919, %v837
      %v954 = vsel %vm948, %v921, %v839
      %v956 = vsel %vm948, %v923, %v841
      %v958 = vsel %vm948, %v925, %v843
      %v960 = vsel %vm948, %v927, %v845
      %v962 = vsel %vm948, %v929, %v847
      %v964 = vsel %vm948, %v931, %v849
      %v966 = vsel %vm948, %v933, %v851
      %v968 = vsel %vm948, %v935, %v853
      %v970 = vsel %vm948, %v937, %v855
      %v972 = vsel %vm948, %v939, %v857
      %v974 = vsel %vm948, %v941, %v859
      %v976 = vsel %vm948, %v943, %v861
      %v978 = vsel %vm948, %v945, %v863
      %v980 = vsel %vm948, %v947, %v865
      %v981 = vld [vmem:[%s1] sm:$0xff]
      %v983 = vunpack.c.l.b16 %v981
      %v984 = vunpack.c.h.b16 %v981
      %v985 = vpack.c.b16 %v983, %v983
      %v986 = vpack.c.b16 %v984, %v984
      %v987 = vsel %vm915, %v950, 0
      %v989 = vsel %vm915, %v952, 0
      %v991 = vsel %vm915, %v954, 0
      %v993 = vsel %vm915, %v956, 0
      %v995 = vsel %vm915, %v958, 0
      %v997 = vsel %vm915, %v960, 0
      %v999 = vsel %vm915, %v962, 0
      %v1001 = vsel %vm915, %v964, 0
      %v1003 = vsel %vm915, %v966, 0
      %v1005 = vsel %vm915, %v968, 0
      %v1007 = vsel %vm915, %v970, 0
      %v1009 = vsel %vm915, %v972, 0
      %v1011 = vsel %vm915, %v974, 0
      %v1013 = vsel %vm915, %v976, 0
      %v1015 = vsel %vm915, %v978, 0
      %v1017 = vsel %vm915, %v980, 0
      %vm1019 = vcmask 1043456
      %v1021 = vsel %vm1019, %v985, 0
      %v1024 = vsel %vm1019, %v986, 0
      %1026 = vmatprep.subr.bf16.mxu0 %v1024
      %1027 = vmatpush1.bf16.msra.mxu0 %v1021
      %1028 = vmatprep.subr.bf16.mxu0 0
      %1029 = vmatpush1.bf16.msra.mxu0 0
      %1030 = vmatprep.subr.bf16.mxu0 0
      %1031 = vmatpush1.bf16.msra.mxu0 0
      %1032 = vmatprep.subr.bf16.mxu0 0
      %1033 = vmatpush1.bf16.msra.mxu0 0
      %1034 = vmatprep.subr.bf16.mxu0 0
      %1035 = vmatpush1.bf16.msra.mxu0 0
      %1036 = vmatprep.subr.bf16.mxu0 0
      %1037 = vmatpush1.bf16.msra.mxu0 0
      %1038 = vmatprep.subr.bf16.mxu0 0
      %1039 = vmatpush1.bf16.msra.mxu0 0
      %1040 = vmatprep.subr.bf16.mxu0 0
      %1041 = vmatpush1.bf16.msra.mxu0 0
      %1042 = vmatprep.subr.bf16.mxu0 0
      %1043 = vmatpush1.bf16.msra.mxu0 0
      %1044 = vmatprep.subr.bf16.mxu0 0
      %1045 = vmatpush1.bf16.msra.mxu0 0
      %1046 = vmatprep.subr.bf16.mxu0 0
      %1047 = vmatpush1.bf16.msra.mxu0 0
      %1048 = vmatprep.subr.bf16.mxu0 0
      %1049 = vmatpush1.bf16.msra.mxu0 0
      %1050 = vmatprep.subr.bf16.mxu0 0
      %1051 = vmatpush1.bf16.msra.mxu0 0
      %1052 = vmatprep.subr.bf16.mxu0 0
      %1053 = vmatpush1.bf16.msra.mxu0 0
      %1054 = vmatprep.subr.bf16.mxu0 0
      %1055 = vmatpush1.bf16.msra.mxu0 0
      %1056 = vmatprep.subr.bf16.mxu0 0
      %1057 = vmatpush1.bf16.msra.mxu0 0
      %1058 = vmatprep.mubr.bf16.mxu0 0
      %1059 = vmatmul.mubr.bf16.gmra.mrb[0].mxu0 %v987
      %v1060 = vpop.f32.mrb[0].mxu0
      %v1061 = vadd.f32 0.0, %v1060
      %v1062 = vpop.f32.mrb[0].mxu0
      %v1063 = vadd.f32 0.0, %v1062
      %v1064 = vpop.f32.mrb[0].mxu0
      %v1065 = vadd.f32 0.0, %v1064
      %v1066 = vpop.f32.mrb[0].mxu0
      %v1067 = vadd.f32 0.0, %v1066
      %1068 = vmatprep.mubr.bf16.mxu0 0
      %1069 = vmatmul.mubr.bf16.gmra.mrb[0].mxu0 %v989
      %v1070 = vpop.f32.mrb[0].mxu0
      %v1071 = vadd.f32 0.0, %v1070
      %v1072 = vpop.f32.mrb[0].mxu0
      %v1073 = vadd.f32 0.0, %v1072
      %v1074 = vpop.f32.mrb[0].mxu0
      %v1075 = vadd.f32 0.0, %v1074
      %v1076 = vpop.f32.mrb[0].mxu0
      %v1077 = vadd.f32 0.0, %v1076
      %1078 = vmatprep.mubr.bf16.mxu0 0
      %1079 = vmatmul.mubr.bf16.gmra.mrb[0].mxu0 %v991
      %v1080 = vpop.f32.mrb[0].mxu0
      %v1081 = vadd.f32 0.0, %v1080
      %v1082 = vpop.f32.mrb[0].mxu0
      %v1083 = vadd.f32 0.0, %v1082
      %v1084 = vpop.f32.mrb[0].mxu0
      %v1085 = vadd.f32 0.0, %v1084
      %v1086 = vpop.f32.mrb[0].mxu0
      %v1087 = vadd.f32 0.0, %v1086
      %1088 = vmatprep.mubr.bf16.mxu0 0
      %1089 = vmatmul.mubr.bf16.gmra.mrb[0].mxu0 %v993
      %v1090 = vpop.f32.mrb[0].mxu0
      %v1091 = vadd.f32 0.0, %v1090
      %v1092 = vpop.f32.mrb[0].mxu0
      %v1093 = vadd.f32 0.0, %v1092
      %v1094 = vpop.f32.mrb[0].mxu0
      %v1095 = vadd.f32 0.0, %v1094
      %v1096 = vpop.f32.mrb[0].mxu0
      %v1097 = vadd.f32 0.0, %v1096
      %1098 = vmatprep.mubr.bf16.mxu0 0
      %1099 = vmatmul.mubr.bf16.gmra.mrb[0].mxu0 %v995
      %v1100 = vpop.f32.mrb[0].mxu0
      %v1101 = vadd.f32 0.0, %v1100
      %v1102 = vpop.f32.mrb[0].mxu0
      %v1103 = vadd.f32 0.0, %v1102
      %v1104 = vpop.f32.mrb[0].mxu0
      %v1105 = vadd.f32 0.0, %v1104
      %v1106 = vpop.f32.mrb[0].mxu0
      %v1107 = vadd.f32 0.0, %v1106
      %1108 = vmatprep.mubr.bf16.mxu0 0
      %1109 = vmatmul.mubr.bf16.gmra.mrb[0].mxu0 %v997
      %v1110 = vpop.f32.mrb[0].mxu0
      %v1111 = vadd.f32 0.0, %v1110
      %v1112 = vpop.f32.mrb[0].mxu0
      %v1113 = vadd.f32 0.0, %v1112
      %v1114 = vpop.f32.mrb[0].mxu0
      %v1115 = vadd.f32 0.0, %v1114
      %v1116 = vpop.f32.mrb[0].mxu0
      %v1117 = vadd.f32 0.0, %v1116
      %1118 = vmatprep.mubr.bf16.mxu0 0
      %1119 = vmatmul.mubr.bf16.gmra.mrb[0].mxu0 %v999
      %v1120 = vpop.f32.mrb[0].mxu0
      %v1121 = vadd.f32 0.0, %v1120
      %v1122 = vpop.f32.mrb[0].mxu0
      %v1123 = vadd.f32 0.0, %v1122
      %v1124 = vpop.f32.mrb[0].mxu0
      %v1125 = vadd.f32 0.0, %v1124
      %v1126 = vpop.f32.mrb[0].mxu0
      %v1127 = vadd.f32 0.0, %v1126
      %1128 = vmatprep.mubr.bf16.mxu0 0
      %1129 = vmatmul.mubr.bf16.gmra.mrb[0].mxu0 %v1001
      %v1130 = vpop.f32.mrb[0].mxu0
      %v1131 = vadd.f32 0.0, %v1130
      %v1132 = vpop.f32.mrb[0].mxu0
      %v1133 = vadd.f32 0.0, %v1132
      %v1134 = vpop.f32.mrb[0].mxu0
      %v1135 = vadd.f32 0.0, %v1134
      %v1136 = vpop.f32.mrb[0].mxu0
      %v1137 = vadd.f32 0.0, %v1136
      %1138 = vmatprep.mubr.bf16.mxu0 0
      %1139 = vmatmul.mubr.bf16.gmra.mrb[0].mxu0 %v1003
      %v1140 = vpop.f32.mrb[0].mxu0
      %v1141 = vadd.f32 0.0, %v1140
      %v1142 = vpop.f32.mrb[0].mxu0
      %v1143 = vadd.f32 0.0, %v1142
      %v1144 = vpop.f32.mrb[0].mxu0
      %v1145 = vadd.f32 0.0, %v1144
      %v1146 = vpop.f32.mrb[0].mxu0
      %v1147 = vadd.f32 0.0, %v1146
      %1148 = vmatprep.mubr.bf16.mxu0 0
      %1149 = vmatmul.mubr.bf16.gmra.mrb[0].mxu0 %v1005
      %v1150 = vpop.f32.mrb[0].mxu0
      %v1151 = vadd.f32 0.0, %v1150
      %v1152 = vpop.f32.mrb[0].mxu0
      %v1153 = vadd.f32 0.0, %v1152
      %v1154 = vpop.f32.mrb[0].mxu0
      %v1155 = vadd.f32 0.0, %v1154
      %v1156 = vpop.f32.mrb[0].mxu0
      %v1157 = vadd.f32 0.0, %v1156
      %1158 = vmatprep.mubr.bf16.mxu0 0
      %1159 = vmatmul.mubr.bf16.gmra.mrb[0].mxu0 %v1007
      %v1160 = vpop.f32.mrb[0].mxu0
      %v1161 = vadd.f32 0.0, %v1160
      %v1162 = vpop.f32.mrb[0].mxu0
      %v1163 = vadd.f32 0.0, %v1162
      %v1164 = vpop.f32.mrb[0].mxu0
      %v1165 = vadd.f32 0.0, %v1164
      %v1166 = vpop.f32.mrb[0].mxu0
      %v1167 = vadd.f32 0.0, %v1166
      %1168 = vmatprep.mubr.bf16.mxu0 0
      %1169 = vmatmul.mubr.bf16.gmra.mrb[0].mxu0 %v1009
      %v1170 = vpop.f32.mrb[0].mxu0
      %v1171 = vadd.f32 0.0, %v1170
      %v1172 = vpop.f32.mrb[0].mxu0
      %v1173 = vadd.f32 0.0, %v1172
      %v1174 = vpop.f32.mrb[0].mxu0
      %v1175 = vadd.f32 0.0, %v1174
      %v1176 = vpop.f32.mrb[0].mxu0
      %v1177 = vadd.f32 0.0, %v1176
      %1178 = vmatprep.mubr.bf16.mxu0 0
      %1179 = vmatmul.mubr.bf16.gmra.mrb[0].mxu0 %v1011
      %v1180 = vpop.f32.mrb[0].mxu0
      %v1181 = vadd.f32 0.0, %v1180
      %v1182 = vpop.f32.mrb[0].mxu0
      %v1183 = vadd.f32 0.0, %v1182
      %v1184 = vpop.f32.mrb[0].mxu0
      %v1185 = vadd.f32 0.0, %v1184
      %v1186 = vpop.f32.mrb[0].mxu0
      %v1187 = vadd.f32 0.0, %v1186
      %1188 = vmatprep.mubr.bf16.mxu0 0
      %1189 = vmatmul.mubr.bf16.gmra.mrb[0].mxu0 %v1013
      %v1190 = vpop.f32.mrb[0].mxu0
      %v1191 = vadd.f32 0.0, %v1190
      %v1192 = vpop.f32.mrb[0].mxu0
      %v1193 = vadd.f32 0.0, %v1192
      %v1194 = vpop.f32.mrb[0].mxu0
      %v1195 = vadd.f32 0.0, %v1194
      %v1196 = vpop.f32.mrb[0].mxu0
      %v1197 = vadd.f32 0.0, %v1196
      %1198 = vmatprep.mubr.bf16.mxu0 0
      %1199 = vmatmul.mubr.bf16.gmra.mrb[0].mxu0 %v1015
      %v1200 = vpop.f32.mrb[0].mxu0
      %v1201 = vadd.f32 0.0, %v1200
      %v1202 = vpop.f32.mrb[0].mxu0
      %v1203 = vadd.f32 0.0, %v1202
      %v1204 = vpop.f32.mrb[0].mxu0
      %v1205 = vadd.f32 0.0, %v1204
      %v1206 = vpop.f32.mrb[0].mxu0
      %v1207 = vadd.f32 0.0, %v1206
      %1208 = vmatprep.mubr.bf16.mxu0 0
      %1209 = vmatmul.mubr.bf16.gmra.mrb[0].mxu0 %v1017
      %v1210 = vpop.f32.mrb[0].mxu0
      %v1211 = vadd.f32 0.0, %v1210
      %v1212 = vpop.f32.mrb[0].mxu0
      %v1213 = vadd.f32 0.0, %v1212
      %v1214 = vpop.f32.mrb[0].mxu0
      %v1215 = vadd.f32 0.0, %v1214
      %v1216 = vpop.f32.mrb[0].mxu0
      %v1217 = vadd.f32 0.0, %v1216
      %1218 = vdwg.mxu0
      %v1219 = vld [vmem:[%s2] sm:$0xff]
      %v1220 = vld [vmem:[%s2 + $0x8] sm:$0xff]
      %v1223 = vunpack.c.l.b16 %v1219
      %v1224 = vunpack.c.h.b16 %v1219
      %v1225 = vunpack.c.l.b16 %v1220
      %v1226 = vunpack.c.h.b16 %v1220
      %v1227 = vpack.c.b16 %v1225, %v1223
      %v1228 = vpack.c.b16 %v1226, %v1224
      %vm1231 = vcmask 130048
      %v1232 = vsel %vm1231, %v950, 0
      %v1234 = vsel %vm1231, %v952, 0
      %v1236 = vsel %vm1231, %v954, 0
      %v1238 = vsel %vm1231, %v956, 0
      %v1240 = vsel %vm1231, %v958, 0
      %v1242 = vsel %vm1231, %v960, 0
      %v1244 = vsel %vm1231, %v962, 0
      %v1246 = vsel %vm1231, %v964, 0
      %v1248 = vsel %vm1231, %v966, 0
      %v1250 = vsel %vm1231, %v968, 0
      %v1252 = vsel %vm1231, %v970, 0
      %v1254 = vsel %vm1231, %v972, 0
      %v1256 = vsel %vm1231, %v974, 0
      %v1258 = vsel %vm1231, %v976, 0
      %v1260 = vsel %vm1231, %v978, 0
      %v1262 = vsel %vm1231, %v980, 0
      %1264 = vmatprep.subr.bf16.mxu0 %v1228
      %1265 = vmatpush1.bf16.msra.mxu0 %v1227
      %1266 = vmatprep.subr.bf16.mxu0 0
      %1267 = vmatpush1.bf16.msra.mxu0 0
      %1268 = vmatprep.subr.bf16.mxu0 0
      %1269 = vmatpush1.bf16.msra.mxu0 0
      %1270 = vmatprep.subr.bf16.mxu0 0
      %1271 = vmatpush1.bf16.msra.mxu0 0
      %1272 = vmatprep.subr.bf16.mxu0 0
      %1273 = vmatpush1.bf16.msra.mxu0 0
      %1274 = vmatprep.subr.bf16.mxu0 0
      %1275 = vmatpush1.bf16.msra.mxu0 0
      %1276 = vmatprep.subr.bf16.mxu0 0
      %1277 = vmatpush1.bf16.msra.mxu0 0
      %1278 = vmatprep.subr.bf16.mxu0 0
      %1279 = vmatpush1.bf16.msra.mxu0 0
      %1280 = vmatprep.subr.bf16.mxu0 0
      %1281 = vmatpush1.bf16.msra.mxu0 0
      %1282 = vmatprep.subr.bf16.mxu0 0
      %1283 = vmatpush1.bf16.msra.mxu0 0
      %1284 = vmatprep.subr.bf16.mxu0 0
      %1285 = vmatpush1.bf16.msra.mxu0 0
      %1286 = vmatprep.subr.bf16.mxu0 0
      %1287 = vmatpush1.bf16.msra.mxu0 0
      %1288 = vmatprep.subr.bf16.mxu0 0
      %1289 = vmatpush1.bf16.msra.mxu0 0
      %1290 = vmatprep.subr.bf16.mxu0 0
      %1291 = vmatpush1.bf16.msra.mxu0 0
      %1292 = vmatprep.subr.bf16.mxu0 0
      %1293 = vmatpush1.bf16.msra.mxu0 0
      %1294 = vmatprep.subr.bf16.mxu0 0
      %1295 = vmatpush1.bf16.msra.mxu0 0
      %1296 = vmatprep.mubr.bf16.mxu0 0
      %1297 = vmatmul.mubr.bf16.gmra.mrb[0].mxu0 %v1232
      %v1298 = vpop.f32.mrb[0].mxu0
      %v1299 = vadd.f32 0.0, %v1298
      %v1300 = vpop.f32.mrb[0].mxu0
      %v1301 = vadd.f32 0.0, %v1300
      %v1302 = vpop.f32.mrb[0].mxu0
      %v1303 = vadd.f32 0.0, %v1302
      %v1304 = vpop.f32.mrb[0].mxu0
      %v1305 = vadd.f32 0.0, %v1304
      %1306 = vmatprep.mubr.bf16.mxu0 0
      %1307 = vmatmul.mubr.bf16.gmra.mrb[0].mxu0 %v1234
      %v1308 = vpop.f32.mrb[0].mxu0
      %v1309 = vadd.f32 0.0, %v1308
      %v1310 = vpop.f32.mrb[0].mxu0
      %v1311 = vadd.f32 0.0, %v1310
      %v1312 = vpop.f32.mrb[0].mxu0
      %v1313 = vadd.f32 0.0, %v1312
      %v1314 = vpop.f32.mrb[0].mxu0
      %v1315 = vadd.f32 0.0, %v1314
      %1316 = vmatprep.mubr.bf16.mxu0 0
      %1317 = vmatmul.mubr.bf16.gmra.mrb[0].mxu0 %v1236
      %v1318 = vpop.f32.mrb[0].mxu0
      %v1319 = vadd.f32 0.0, %v1318
      %v1320 = vpop.f32.mrb[0].mxu0
      %v1321 = vadd.f32 0.0, %v1320
      %v1322 = vpop.f32.mrb[0].mxu0
      %v1323 = vadd.f32 0.0, %v1322
      %v1324 = vpop.f32.mrb[0].mxu0
      %v1325 = vadd.f32 0.0, %v1324
      %1326 = vmatprep.mubr.bf16.mxu0 0
      %1327 = vmatmul.mubr.bf16.gmra.mrb[0].mxu0 %v1238
      %v1328 = vpop.f32.mrb[0].mxu0
      %v1329 = vadd.f32 0.0, %v1328
      %v1330 = vpop.f32.mrb[0].mxu0
      %v1331 = vadd.f32 0.0, %v1330
      %v1332 = vpop.f32.mrb[0].mxu0
      %v1333 = vadd.f32 0.0, %v1332
      %v1334 = vpop.f32.mrb[0].mxu0
      %v1335 = vadd.f32 0.0, %v1334
      %1336 = vmatprep.mubr.bf16.mxu0 0
      %1337 = vmatmul.mubr.bf16.gmra.mrb[0].mxu0 %v1240
      %v1338 = vpop.f32.mrb[0].mxu0
      %v1339 = vadd.f32 0.0, %v1338
      %v1340 = vpop.f32.mrb[0].mxu0
      %v1341 = vadd.f32 0.0, %v1340
      %v1342 = vpop.f32.mrb[0].mxu0
      %v1343 = vadd.f32 0.0, %v1342
      %v1344 = vpop.f32.mrb[0].mxu0
      %v1345 = vadd.f32 0.0, %v1344
      %1346 = vmatprep.mubr.bf16.mxu0 0
      %1347 = vmatmul.mubr.bf16.gmra.mrb[0].mxu0 %v1242
      %v1348 = vpop.f32.mrb[0].mxu0
      %v1349 = vadd.f32 0.0, %v1348
      %v1350 = vpop.f32.mrb[0].mxu0
      %v1351 = vadd.f32 0.0, %v1350
      %v1352 = vpop.f32.mrb[0].mxu0
      %v1353 = vadd.f32 0.0, %v1352
      %v1354 = vpop.f32.mrb[0].mxu0
      %v1355 = vadd.f32 0.0, %v1354
      %1356 = vmatprep.mubr.bf16.mxu0 0
      %1357 = vmatmul.mubr.bf16.gmra.mrb[0].mxu0 %v1244
      %v1358 = vpop.f32.mrb[0].mxu0
      %v1359 = vadd.f32 0.0, %v1358
      %v1360 = vpop.f32.mrb[0].mxu0
      %v1361 = vadd.f32 0.0, %v1360
      %v1362 = vpop.f32.mrb[0].mxu0
      %v1363 = vadd.f32 0.0, %v1362
      %v1364 = vpop.f32.mrb[0].mxu0
      %v1365 = vadd.f32 0.0, %v1364
      %1366 = vmatprep.mubr.bf16.mxu0 0
      %1367 = vmatmul.mubr.bf16.gmra.mrb[0].mxu0 %v1246
      %v1368 = vpop.f32.mrb[0].mxu0
      %v1369 = vadd.f32 0.0, %v1368
      %v1370 = vpop.f32.mrb[0].mxu0
      %v1371 = vadd.f32 0.0, %v1370
      %v1372 = vpop.f32.mrb[0].mxu0
      %v1373 = vadd.f32 0.0, %v1372
      %v1374 = vpop.f32.mrb[0].mxu0
      %v1375 = vadd.f32 0.0, %v1374
      %1376 = vmatprep.mubr.bf16.mxu0 0
      %1377 = vmatmul.mubr.bf16.gmra.mrb[0].mxu0 %v1248
      %v1378 = vpop.f32.mrb[0].mxu0
      %v1379 = vadd.f32 0.0, %v1378
      %v1380 = vpop.f32.mrb[0].mxu0
      %v1381 = vadd.f32 0.0, %v1380
      %v1382 = vpop.f32.mrb[0].mxu0
      %v1383 = vadd.f32 0.0, %v1382
      %v1384 = vpop.f32.mrb[0].mxu0
      %v1385 = vadd.f32 0.0, %v1384
      %1386 = vmatprep.mubr.bf16.mxu0 0
      %1387 = vmatmul.mubr.bf16.gmra.mrb[0].mxu0 %v1250
      %v1388 = vpop.f32.mrb[0].mxu0
      %v1389 = vadd.f32 0.0, %v1388
      %v1390 = vpop.f32.mrb[0].mxu0
      %v1391 = vadd.f32 0.0, %v1390
      %v1392 = vpop.f32.mrb[0].mxu0
      %v1393 = vadd.f32 0.0, %v1392
      %v1394 = vpop.f32.mrb[0].mxu0
      %v1395 = vadd.f32 0.0, %v1394
      %1396 = vmatprep.mubr.bf16.mxu0 0
      %1397 = vmatmul.mubr.bf16.gmra.mrb[0].mxu0 %v1252
      %v1398 = vpop.f32.mrb[0].mxu0
      %v1399 = vadd.f32 0.0, %v1398
      %v1400 = vpop.f32.mrb[0].mxu0
      %v1401 = vadd.f32 0.0, %v1400
      %v1402 = vpop.f32.mrb[0].mxu0
      %v1403 = vadd.f32 0.0, %v1402
      %v1404 = vpop.f32.mrb[0].mxu0
      %v1405 = vadd.f32 0.0, %v1404
      %1406 = vmatprep.mubr.bf16.mxu0 0
      %1407 = vmatmul.mubr.bf16.gmra.mrb[0].mxu0 %v1254
      %v1408 = vpop.f32.mrb[0].mxu0
      %v1409 = vadd.f32 0.0, %v1408
      %v1410 = vpop.f32.mrb[0].mxu0
      %v1411 = vadd.f32 0.0, %v1410
      %v1412 = vpop.f32.mrb[0].mxu0
      %v1413 = vadd.f32 0.0, %v1412
      %v1414 = vpop.f32.mrb[0].mxu0
      %v1415 = vadd.f32 0.0, %v1414
      %1416 = vmatprep.mubr.bf16.mxu0 0
      %1417 = vmatmul.mubr.bf16.gmra.mrb[0].mxu0 %v1256
      %v1418 = vpop.f32.mrb[0].mxu0
      %v1419 = vadd.f32 0.0, %v1418
      %v1420 = vpop.f32.mrb[0].mxu0
      %v1421 = vadd.f32 0.0, %v1420
      %v1422 = vpop.f32.mrb[0].mxu0
      %v1423 = vadd.f32 0.0, %v1422
      %v1424 = vpop.f32.mrb[0].mxu0
      %v1425 = vadd.f32 0.0, %v1424
      %1426 = vmatprep.mubr.bf16.mxu0 0
      %1427 = vmatmul.mubr.bf16.gmra.mrb[0].mxu0 %v1258
      %v1428 = vpop.f32.mrb[0].mxu0
      %v1429 = vadd.f32 0.0, %v1428
      %v1430 = vpop.f32.mrb[0].mxu0
      %v1431 = vadd.f32 0.0, %v1430
      %v1432 = vpop.f32.mrb[0].mxu0
      %v1433 = vadd.f32 0.0, %v1432
      %v1434 = vpop.f32.mrb[0].mxu0
      %v1435 = vadd.f32 0.0, %v1434
      %1436 = vmatprep.mubr.bf16.mxu0 0
      %1437 = vmatmul.mubr.bf16.gmra.mrb[0].mxu0 %v1260
      %v1438 = vpop.f32.mrb[0].mxu0
      %v1439 = vadd.f32 0.0, %v1438
      %v1440 = vpop.f32.mrb[0].mxu0
      %v1441 = vadd.f32 0.0, %v1440
      %v1442 = vpop.f32.mrb[0].mxu0
      %v1443 = vadd.f32 0.0, %v1442
      %v1444 = vpop.f32.mrb[0].mxu0
      %v1445 = vadd.f32 0.0, %v1444
      %1446 = vmatprep.mubr.bf16.mxu0 0
      %1447 = vmatmul.mubr.bf16.gmra.mrb[0].mxu0 %v1262
      %v1448 = vpop.f32.mrb[0].mxu0
      %v1449 = vadd.f32 0.0, %v1448
      %v1450 = vpop.f32.mrb[0].mxu0
      %v1451 = vadd.f32 0.0, %v1450
      %v1452 = vpop.f32.mrb[0].mxu0
      %v1453 = vadd.f32 0.0, %v1452
      %v1454 = vpop.f32.mrb[0].mxu0
      %v1455 = vadd.f32 0.0, %v1454
      %1456 = vdwg.mxu0
      %v1457 = vadd.f32 %v1061, %v1065
      %v1458 = vadd.f32 %v1457, %v1071
      %v1459 = vadd.f32 %v1458, %v1075
      %v1460 = vadd.f32 %v1459, %v1081
      %v1461 = vadd.f32 %v1460, %v1085
      %v1462 = vadd.f32 %v1461, %v1091
      %v1463 = vadd.f32 %v1462, %v1095
      %v1464 = vadd.f32 %v1463, %v1101
      %v1465 = vadd.f32 %v1464, %v1105
      %v1466 = vadd.f32 %v1465, %v1111
      %v1467 = vadd.f32 %v1466, %v1115
      %v1468 = vadd.f32 %v1467, %v1121
      %v1469 = vadd.f32 %v1468, %v1125
      %v1470 = vadd.f32 %v1469, %v1131
      %v1471 = vadd.f32 %v1470, %v1135
      %v1472 = vadd.f32 %v1471, %v1141
      %v1473 = vadd.f32 %v1472, %v1145
      %v1474 = vadd.f32 %v1473, %v1151
      %v1475 = vadd.f32 %v1474, %v1155
      %v1476 = vadd.f32 %v1475, %v1161
      %v1477 = vadd.f32 %v1476, %v1165
      %v1478 = vadd.f32 %v1477, %v1171
      %v1479 = vadd.f32 %v1478, %v1175
      %v1480 = vadd.f32 %v1479, %v1181
      %v1481 = vadd.f32 %v1480, %v1185
      %v1482 = vadd.f32 %v1481, %v1191
      %v1483 = vadd.f32 %v1482, %v1195
      %v1484 = vadd.f32 %v1483, %v1201
      %v1485 = vadd.f32 %v1484, %v1205
      %v1486 = vadd.f32 %v1485, %v1211
      %v1487 = vadd.f32 %v1486, %v1215
      %v1488 = vrot.slane %v1487, 4
      %v1489 = vadd.f32 %v1487, %v1488
      %v1490 = vrot.slane %v1489, 2
      %v1491 = vadd.f32 %v1489, %v1490
      %v1492 = vrot.slane %v1491, 1
      %v1493 = vadd.f32 %v1491, %v1492
      %v1494 = vadd.f32 %v1063, %v1067
      %v1495 = vadd.f32 %v1494, %v1073
      %v1496 = vadd.f32 %v1495, %v1077
      %v1497 = vadd.f32 %v1496, %v1083
      %v1498 = vadd.f32 %v1497, %v1087
      %v1499 = vadd.f32 %v1498, %v1093
      %v1500 = vadd.f32 %v1499, %v1097
      %v1501 = vadd.f32 %v1500, %v1103
      %v1502 = vadd.f32 %v1501, %v1107
      %v1503 = vadd.f32 %v1502, %v1113
      %v1504 = vadd.f32 %v1503, %v1117
      %v1505 = vadd.f32 %v1504, %v1123
      %v1506 = vadd.f32 %v1505, %v1127
      %v1507 = vadd.f32 %v1506, %v1133
      %v1508 = vadd.f32 %v1507, %v1137
      %v1509 = vadd.f32 %v1508, %v1143
      %v1510 = vadd.f32 %v1509, %v1147
      %v1511 = vadd.f32 %v1510, %v1153
      %v1512 = vadd.f32 %v1511, %v1157
      %v1513 = vadd.f32 %v1512, %v1163
      %v1514 = vadd.f32 %v1513, %v1167
      %v1515 = vadd.f32 %v1514, %v1173
      %v1516 = vadd.f32 %v1515, %v1177
      %v1517 = vadd.f32 %v1516, %v1183
      %v1518 = vadd.f32 %v1517, %v1187
      %v1519 = vadd.f32 %v1518, %v1193
      %v1520 = vadd.f32 %v1519, %v1197
      %v1521 = vadd.f32 %v1520, %v1203
      %v1522 = vadd.f32 %v1521, %v1207
      %v1523 = vadd.f32 %v1522, %v1213
      %v1524 = vadd.f32 %v1523, %v1217
      %v1525 = vrot.slane %v1524, 4
      %v1526 = vadd.f32 %v1524, %v1525
      %v1527 = vrot.slane %v1526, 2
      %v1528 = vadd.f32 %v1526, %v1527
      %v1529 = vrot.slane %v1528, 1
      %v1530 = vadd.f32 %v1528, %v1529
      %v1531 = vadd.f32 %v1299, %v1303
      %v1532 = vadd.f32 %v1531, %v1309
      %v1533 = vadd.f32 %v1532, %v1313
      %v1534 = vadd.f32 %v1533, %v1319
      %v1535 = vadd.f32 %v1534, %v1323
      %v1536 = vadd.f32 %v1535, %v1329
      %v1537 = vadd.f32 %v1536, %v1333
      %v1538 = vadd.f32 %v1537, %v1339
      %v1539 = vadd.f32 %v1538, %v1343
      %v1540 = vadd.f32 %v1539, %v1349
      %v1541 = vadd.f32 %v1540, %v1353
      %v1542 = vadd.f32 %v1541, %v1359
      %v1543 = vadd.f32 %v1542, %v1363
      %v1544 = vadd.f32 %v1543, %v1369
      %v1545 = vadd.f32 %v1544, %v1373
      %v1546 = vadd.f32 %v1545, %v1379
      %v1547 = vadd.f32 %v1546, %v1383
      %v1548 = vadd.f32 %v1547, %v1389
      %v1549 = vadd.f32 %v1548, %v1393
      %v1550 = vadd.f32 %v1549, %v1399
      %v1551 = vadd.f32 %v1550, %v1403
      %v1552 = vadd.f32 %v1551, %v1409
      %v1553 = vadd.f32 %v1552, %v1413
      %v1554 = vadd.f32 %v1553, %v1419
      %v1555 = vadd.f32 %v1554, %v1423
      %v1556 = vadd.f32 %v1555, %v1429
      %v1557 = vadd.f32 %v1556, %v1433
      %v1558 = vadd.f32 %v1557, %v1439
      %v1559 = vadd.f32 %v1558, %v1443
      %v1560 = vadd.f32 %v1559, %v1449
      %v1561 = vadd.f32 %v1560, %v1453
      %v1562 = vrot.slane %v1561, 4
      %v1563 = vadd.f32 %v1561, %v1562
      %v1564 = vrot.slane %v1563, 2
      %v1565 = vadd.f32 %v1563, %v1564
      %v1566 = vrot.slane %v1565, 1
      %v1567 = vadd.f32 %v1565, %v1566
      %v1568 = vadd.f32 %v1301, %v1305
      %v1569 = vadd.f32 %v1568, %v1311
      %v1570 = vadd.f32 %v1569, %v1315
      %v1571 = vadd.f32 %v1570, %v1321
      %v1572 = vadd.f32 %v1571, %v1325
      %v1573 = vadd.f32 %v1572, %v1331
      %v1574 = vadd.f32 %v1573, %v1335
      %v1575 = vadd.f32 %v1574, %v1341
      %v1576 = vadd.f32 %v1575, %v1345
      %v1577 = vadd.f32 %v1576, %v1351
      %v1578 = vadd.f32 %v1577, %v1355
      %v1579 = vadd.f32 %v1578, %v1361
      %v1580 = vadd.f32 %v1579, %v1365
      %v1581 = vadd.f32 %v1580, %v1371
      %v1582 = vadd.f32 %v1581, %v1375
      %v1583 = vadd.f32 %v1582, %v1381
      %v1584 = vadd.f32 %v1583, %v1385
      %v1585 = vadd.f32 %v1584, %v1391
      %v1586 = vadd.f32 %v1585, %v1395
      %v1587 = vadd.f32 %v1586, %v1401
      %v1588 = vadd.f32 %v1587, %v1405
      %v1589 = vadd.f32 %v1588, %v1411
      %v1590 = vadd.f32 %v1589, %v1415
      %v1591 = vadd.f32 %v1590, %v1421
      %v1592 = vadd.f32 %v1591, %v1425
      %v1593 = vadd.f32 %v1592, %v1431
      %v1594 = vadd.f32 %v1593, %v1435
      %v1595 = vadd.f32 %v1594, %v1441
      %v1596 = vadd.f32 %v1595, %v1445
      %v1597 = vadd.f32 %v1596, %v1451
      %v1598 = vadd.f32 %v1597, %v1455
      %v1599 = vrot.slane %v1598, 4
      %v1600 = vadd.f32 %v1598, %v1599
      %v1601 = vrot.slane %v1600, 2
      %v1602 = vadd.f32 %v1600, %v1601
      %v1603 = vrot.slane %v1602, 1
      %v1604 = vadd.f32 %v1602, %v1603
      %v1605 = vadd.f32 %v1493, %v1567
      %v1606 = vadd.f32 %v1530, %v1604
      %v1607 = vmul.f32 %v1061, %v1061
      %v1608 = vmul.f32 %v1063, %v1063
      %v1609 = vmul.f32 %v1065, %v1065
      %v1610 = vmul.f32 %v1067, %v1067
      %v1611 = vmul.f32 %v1071, %v1071
      %v1612 = vmul.f32 %v1073, %v1073
      %v1613 = vmul.f32 %v1075, %v1075
      %v1614 = vmul.f32 %v1077, %v1077
      %v1615 = vmul.f32 %v1081, %v1081
      %v1616 = vmul.f32 %v1083, %v1083
      %v1617 = vmul.f32 %v1085, %v1085
      %v1618 = vmul.f32 %v1087, %v1087
      %v1619 = vmul.f32 %v1091, %v1091
      %v1620 = vmul.f32 %v1093, %v1093
      %v1621 = vmul.f32 %v1095, %v1095
      %v1622 = vmul.f32 %v1097, %v1097
      %v1623 = vmul.f32 %v1101, %v1101
      %v1624 = vmul.f32 %v1103, %v1103
      %v1625 = vmul.f32 %v1105, %v1105
      %v1626 = vmul.f32 %v1107, %v1107
      %v1627 = vmul.f32 %v1111, %v1111
      %v1628 = vmul.f32 %v1113, %v1113
      %v1629 = vmul.f32 %v1115, %v1115
      %v1630 = vmul.f32 %v1117, %v1117
      %v1631 = vmul.f32 %v1121, %v1121
      %v1632 = vmul.f32 %v1123, %v1123
      %v1633 = vmul.f32 %v1125, %v1125
      %v1634 = vmul.f32 %v1127, %v1127
      %v1635 = vmul.f32 %v1131, %v1131
      %v1636 = vmul.f32 %v1133, %v1133
      %v1637 = vmul.f32 %v1135, %v1135
      %v1638 = vmul.f32 %v1137, %v1137
      %v1639 = vmul.f32 %v1141, %v1141
      %v1640 = vmul.f32 %v1143, %v1143
      %v1641 = vmul.f32 %v1145, %v1145
      %v1642 = vmul.f32 %v1147, %v1147
      %v1643 = vmul.f32 %v1151, %v1151
      %v1644 = vmul.f32 %v1153, %v1153
      %v1645 = vmul.f32 %v1155, %v1155
      %v1646 = vmul.f32 %v1157, %v1157
      %v1647 = vmul.f32 %v1161, %v1161
      %v1648 = vmul.f32 %v1163, %v1163
      %v1649 = vmul.f32 %v1165, %v1165
      %v1650 = vmul.f32 %v1167, %v1167
      %v1651 = vmul.f32 %v1171, %v1171
      %v1652 = vmul.f32 %v1173, %v1173
      %v1653 = vmul.f32 %v1175, %v1175
      %v1654 = vmul.f32 %v1177, %v1177
      %v1655 = vmul.f32 %v1181, %v1181
      %v1656 = vmul.f32 %v1183, %v1183
      %v1657 = vmul.f32 %v1185, %v1185
      %v1658 = vmul.f32 %v1187, %v1187
      %v1659 = vmul.f32 %v1191, %v1191
      %v1660 = vmul.f32 %v1193, %v1193
      %v1661 = vmul.f32 %v1195, %v1195
      %v1662 = vmul.f32 %v1197, %v1197
      %v1663 = vmul.f32 %v1201, %v1201
      %v1664 = vmul.f32 %v1203, %v1203
      %v1665 = vmul.f32 %v1205, %v1205
      %v1666 = vmul.f32 %v1207, %v1207
      %v1667 = vmul.f32 %v1211, %v1211
      %v1668 = vmul.f32 %v1213, %v1213
      %v1669 = vmul.f32 %v1215, %v1215
      %v1670 = vmul.f32 %v1217, %v1217
      %v1671 = vadd.f32 %v1607, %v1609
      %v1672 = vadd.f32 %v1671, %v1611
      %v1673 = vadd.f32 %v1672, %v1613
      %v1674 = vadd.f32 %v1673, %v1615
      %v1675 = vadd.f32 %v1674, %v1617
      %v1676 = vadd.f32 %v1675, %v1619
      %v1677 = vadd.f32 %v1676, %v1621
      %v1678 = vadd.f32 %v1677, %v1623
      %v1679 = vadd.f32 %v1678, %v1625
      %v1680 = vadd.f32 %v1679, %v1627
      %v1681 = vadd.f32 %v1680, %v1629
      %v1682 = vadd.f32 %v1681, %v1631
      %v1683 = vadd.f32 %v1682, %v1633
      %v1684 = vadd.f32 %v1683, %v1635
      %v1685 = vadd.f32 %v1684, %v1637
      %v1686 = vadd.f32 %v1685, %v1639
      %v1687 = vadd.f32 %v1686, %v1641
      %v1688 = vadd.f32 %v1687, %v1643
      %v1689 = vadd.f32 %v1688, %v1645
      %v1690 = vadd.f32 %v1689, %v1647
      %v1691 = vadd.f32 %v1690, %v1649
      %v1692 = vadd.f32 %v1691, %v1651
      %v1693 = vadd.f32 %v1692, %v1653
      %v1694 = vadd.f32 %v1693, %v1655
      %v1695 = vadd.f32 %v1694, %v1657
      %v1696 = vadd.f32 %v1695, %v1659
      %v1697 = vadd.f32 %v1696, %v1661
      %v1698 = vadd.f32 %v1697, %v1663
      %v1699 = vadd.f32 %v1698, %v1665
      %v1700 = vadd.f32 %v1699, %v1667
      %v1701 = vadd.f32 %v1700, %v1669
      %v1702 = vrot.slane %v1701, 4
      %v1703 = vadd.f32 %v1701, %v1702
      %v1704 = vrot.slane %v1703, 2
      %v1705 = vadd.f32 %v1703, %v1704
      %v1706 = vrot.slane %v1705, 1
      %v1707 = vadd.f32 %v1705, %v1706
      %v1708 = vadd.f32 %v1608, %v1610
      %v1709 = vadd.f32 %v1708, %v1612
      %v1710 = vadd.f32 %v1709, %v1614
      %v1711 = vadd.f32 %v1710, %v1616
      %v1712 = vadd.f32 %v1711, %v1618
      %v1713 = vadd.f32 %v1712, %v1620
      %v1714 = vadd.f32 %v1713, %v1622
      %v1715 = vadd.f32 %v1714, %v1624
      %v1716 = vadd.f32 %v1715, %v1626
      %v1717 = vadd.f32 %v1716, %v1628
      %v1718 = vadd.f32 %v1717, %v1630
      %v1719 = vadd.f32 %v1718, %v1632
      %v1720 = vadd.f32 %v1719, %v1634
      %v1721 = vadd.f32 %v1720, %v1636
      %v1722 = vadd.f32 %v1721, %v1638
      %v1723 = vadd.f32 %v1722, %v1640
      %v1724 = vadd.f32 %v1723, %v1642
      %v1725 = vadd.f32 %v1724, %v1644
      %v1726 = vadd.f32 %v1725, %v1646
      %v1727 = vadd.f32 %v1726, %v1648
      %v1728 = vadd.f32 %v1727, %v1650
      %v1729 = vadd.f32 %v1728, %v1652
      %v1730 = vadd.f32 %v1729, %v1654
      %v1731 = vadd.f32 %v1730, %v1656
      %v1732 = vadd.f32 %v1731, %v1658
      %v1733 = vadd.f32 %v1732, %v1660
      %v1734 = vadd.f32 %v1733, %v1662
      %v1735 = vadd.f32 %v1734, %v1664
      %v1736 = vadd.f32 %v1735, %v1666
      %v1737 = vadd.f32 %v1736, %v1668
      %v1738 = vadd.f32 %v1737, %v1670
      %v1739 = vrot.slane %v1738, 4
      %v1740 = vadd.f32 %v1738, %v1739
      %v1741 = vrot.slane %v1740, 2
      %v1742 = vadd.f32 %v1740, %v1741
      %v1743 = vrot.slane %v1742, 1
      %v1744 = vadd.f32 %v1742, %v1743
      %v1745 = vmul.f32 %v1299, %v1299
      %v1746 = vmul.f32 %v1301, %v1301
      %v1747 = vmul.f32 %v1303, %v1303
      %v1748 = vmul.f32 %v1305, %v1305
      %v1749 = vmul.f32 %v1309, %v1309
      %v1750 = vmul.f32 %v1311, %v1311
      %v1751 = vmul.f32 %v1313, %v1313
      %v1752 = vmul.f32 %v1315, %v1315
      %v1753 = vmul.f32 %v1319, %v1319
      %v1754 = vmul.f32 %v1321, %v1321
      %v1755 = vmul.f32 %v1323, %v1323
      %v1756 = vmul.f32 %v1325, %v1325
      %v1757 = vmul.f32 %v1329, %v1329
      %v1758 = vmul.f32 %v1331, %v1331
      %v1759 = vmul.f32 %v1333, %v1333
      %v1760 = vmul.f32 %v1335, %v1335
      %v1761 = vmul.f32 %v1339, %v1339
      %v1762 = vmul.f32 %v1341, %v1341
      %v1763 = vmul.f32 %v1343, %v1343
      %v1764 = vmul.f32 %v1345, %v1345
      %v1765 = vmul.f32 %v1349, %v1349
      %v1766 = vmul.f32 %v1351, %v1351
      %v1767 = vmul.f32 %v1353, %v1353
      %v1768 = vmul.f32 %v1355, %v1355
      %v1769 = vmul.f32 %v1359, %v1359
      %v1770 = vmul.f32 %v1361, %v1361
      %v1771 = vmul.f32 %v1363, %v1363
      %v1772 = vmul.f32 %v1365, %v1365
      %v1773 = vmul.f32 %v1369, %v1369
      %v1774 = vmul.f32 %v1371, %v1371
      %v1775 = vmul.f32 %v1373, %v1373
      %v1776 = vmul.f32 %v1375, %v1375
      %v1777 = vmul.f32 %v1379, %v1379
      %v1778 = vmul.f32 %v1381, %v1381
      %v1779 = vmul.f32 %v1383, %v1383
      %v1780 = vmul.f32 %v1385, %v1385
      %v1781 = vmul.f32 %v1389, %v1389
      %v1782 = vmul.f32 %v1391, %v1391
      %v1783 = vmul.f32 %v1393, %v1393
      %v1784 = vmul.f32 %v1395, %v1395
      %v1785 = vmul.f32 %v1399, %v1399
      %v1786 = vmul.f32 %v1401, %v1401
      %v1787 = vmul.f32 %v1403, %v1403
      %v1788 = vmul.f32 %v1405, %v1405
      %v1789 = vmul.f32 %v1409, %v1409
      %v1790 = vmul.f32 %v1411, %v1411
      %v1791 = vmul.f32 %v1413, %v1413
      %v1792 = vmul.f32 %v1415, %v1415
      %v1793 = vmul.f32 %v1419, %v1419
      %v1794 = vmul.f32 %v1421, %v1421
      %v1795 = vmul.f32 %v1423, %v1423
      %v1796 = vmul.f32 %v1425, %v1425
      %v1797 = vmul.f32 %v1429, %v1429
      %v1798 = vmul.f32 %v1431, %v1431
      %v1799 = vmul.f32 %v1433, %v1433
      %v1800 = vmul.f32 %v1435, %v1435
      %v1801 = vmul.f32 %v1439, %v1439
      %v1802 = vmul.f32 %v1441, %v1441
      %v1803 = vmul.f32 %v1443, %v1443
      %v1804 = vmul.f32 %v1445, %v1445
      %v1805 = vmul.f32 %v1449, %v1449
      %v1806 = vmul.f32 %v1451, %v1451
      %v1807 = vmul.f32 %v1453, %v1453
      %v1808 = vmul.f32 %v1455, %v1455
      %v1809 = vadd.f32 %v1745, %v1747
      %v1810 = vadd.f32 %v1809, %v1749
      %v1811 = vadd.f32 %v1810, %v1751
      %v1812 = vadd.f32 %v1811, %v1753
      %v1813 = vadd.f32 %v1812, %v1755
      %v1814 = vadd.f32 %v1813, %v1757
      %v1815 = vadd.f32 %v1814, %v1759
      %v1816 = vadd.f32 %v1815, %v1761
      %v1817 = vadd.f32 %v1816, %v1763
      %v1818 = vadd.f32 %v1817, %v1765
      %v1819 = vadd.f32 %v1818, %v1767
      %v1820 = vadd.f32 %v1819, %v1769
      %v1821 = vadd.f32 %v1820, %v1771
      %v1822 = vadd.f32 %v1821, %v1773
      %v1823 = vadd.f32 %v1822, %v1775
      %v1824 = vadd.f32 %v1823, %v1777
      %v1825 = vadd.f32 %v1824, %v1779
      %v1826 = vadd.f32 %v1825, %v1781
      %v1827 = vadd.f32 %v1826, %v1783
      %v1828 = vadd.f32 %v1827, %v1785
      %v1829 = vadd.f32 %v1828, %v1787
      %v1830 = vadd.f32 %v1829, %v1789
      %v1831 = vadd.f32 %v1830, %v1791
      %v1832 = vadd.f32 %v1831, %v1793
      %v1833 = vadd.f32 %v1832, %v1795
      %v1834 = vadd.f32 %v1833, %v1797
      %v1835 = vadd.f32 %v1834, %v1799
      %v1836 = vadd.f32 %v1835, %v1801
      %v1837 = vadd.f32 %v1836, %v1803
      %v1838 = vadd.f32 %v1837, %v1805
      %v1839 = vadd.f32 %v1838, %v1807
      %v1840 = vrot.slane %v1839, 4
      %v1841 = vadd.f32 %v1839, %v1840
      %v1842 = vrot.slane %v1841, 2
      %v1843 = vadd.f32 %v1841, %v1842
      %v1844 = vrot.slane %v1843, 1
      %v1845 = vadd.f32 %v1843, %v1844
      %v1846 = vadd.f32 %v1746, %v1748
      %v1847 = vadd.f32 %v1846, %v1750
      %v1848 = vadd.f32 %v1847, %v1752
      %v1849 = vadd.f32 %v1848, %v1754
      %v1850 = vadd.f32 %v1849, %v1756
      %v1851 = vadd.f32 %v1850, %v1758
      %v1852 = vadd.f32 %v1851, %v1760
      %v1853 = vadd.f32 %v1852, %v1762
      %v1854 = vadd.f32 %v1853, %v1764
      %v1855 = vadd.f32 %v1854, %v1766
      %v1856 = vadd.f32 %v1855, %v1768
      %v1857 = vadd.f32 %v1856, %v1770
      %v1858 = vadd.f32 %v1857, %v1772
      %v1859 = vadd.f32 %v1858, %v1774
      %v1860 = vadd.f32 %v1859, %v1776
      %v1861 = vadd.f32 %v1860, %v1778
      %v1862 = vadd.f32 %v1861, %v1780
      %v1863 = vadd.f32 %v1862, %v1782
      %v1864 = vadd.f32 %v1863, %v1784
      %v1865 = vadd.f32 %v1864, %v1786
      %v1866 = vadd.f32 %v1865, %v1788
      %v1867 = vadd.f32 %v1866, %v1790
      %v1868 = vadd.f32 %v1867, %v1792
      %v1869 = vadd.f32 %v1868, %v1794
      %v1870 = vadd.f32 %v1869, %v1796
      %v1871 = vadd.f32 %v1870, %v1798
      %v1872 = vadd.f32 %v1871, %v1800
      %v1873 = vadd.f32 %v1872, %v1802
      %v1874 = vadd.f32 %v1873, %v1804
      %v1875 = vadd.f32 %v1874, %v1806
      %v1876 = vadd.f32 %v1875, %v1808
      %v1877 = vrot.slane %v1876, 4
      %v1878 = vadd.f32 %v1876, %v1877
      %v1879 = vrot.slane %v1878, 2
      %v1880 = vadd.f32 %v1878, %v1879
      %v1881 = vrot.slane %v1880, 1
      %v1882 = vadd.f32 %v1880, %v1881
      %v1883 = vadd.f32 %v1707, %v1845
      %v1884 = vadd.f32 %v1744, %v1882
      %v1885 = vadd.f32 %v1605, %v1606
      %v1886 = vadd.f32 %v1883, %v1884
      %v1887 = vmul.f32 %v1885, 0.0009765625
      %v1888 = vmul.f32 %v1886, 0.0009765625
      %v1889 = vmul.f32 %v1887, %v1887
      %v1890 = vsub.f32 %v1888, %v1889
      %v1891 = vmax.f32 %v1890, 0.0
      %v1892 = vadd.f32 %v1891, 1e-05
      %v1893 = vrsqrt.pop %v1892
      %v1894 = vsub.f32 0.0, %v1887
      %v1895 = vmul.f32 %v1894, %v1893
      %v1896 = vlaneseq
      %v1897 = vshrl.u32 %v1896, 7
      %v1898 = vsub.s32 0, %v1897
      %v1899 = vrot.slane %v1893, %v1898
      %v1900 = vmul.f32 %v1061, %v1899
      %v1901 = vmul.f32 %v1063, %v1899
      %v1902 = vmul.f32 %v1065, %v1899
      %v1903 = vmul.f32 %v1067, %v1899
      %v1904 = vmul.f32 %v1071, %v1899
      %v1905 = vmul.f32 %v1073, %v1899
      %v1906 = vmul.f32 %v1075, %v1899
      %v1907 = vmul.f32 %v1077, %v1899
      %v1908 = vmul.f32 %v1081, %v1899
      %v1909 = vmul.f32 %v1083, %v1899
      %v1910 = vmul.f32 %v1085, %v1899
      %v1911 = vmul.f32 %v1087, %v1899
      %v1912 = vmul.f32 %v1091, %v1899
      %v1913 = vmul.f32 %v1093, %v1899
      %v1914 = vmul.f32 %v1095, %v1899
      %v1915 = vmul.f32 %v1097, %v1899
      %v1916 = vmul.f32 %v1101, %v1899
      %v1917 = vmul.f32 %v1103, %v1899
      %v1918 = vmul.f32 %v1105, %v1899
      %v1919 = vmul.f32 %v1107, %v1899
      %v1920 = vmul.f32 %v1111, %v1899
      %v1921 = vmul.f32 %v1113, %v1899
      %v1922 = vmul.f32 %v1115, %v1899
      %v1923 = vmul.f32 %v1117, %v1899
      %v1924 = vmul.f32 %v1121, %v1899
      %v1925 = vmul.f32 %v1123, %v1899
      %v1926 = vmul.f32 %v1125, %v1899
      %v1927 = vmul.f32 %v1127, %v1899
      %v1928 = vmul.f32 %v1131, %v1899
      %v1929 = vmul.f32 %v1133, %v1899
      %v1930 = vmul.f32 %v1135, %v1899
      %v1931 = vmul.f32 %v1137, %v1899
      %v1932 = vmul.f32 %v1141, %v1899
      %v1933 = vmul.f32 %v1143, %v1899
      %v1934 = vmul.f32 %v1145, %v1899
      %v1935 = vmul.f32 %v1147, %v1899
      %v1936 = vmul.f32 %v1151, %v1899
      %v1937 = vmul.f32 %v1153, %v1899
      %v1938 = vmul.f32 %v1155, %v1899
      %v1939 = vmul.f32 %v1157, %v1899
      %v1940 = vmul.f32 %v1161, %v1899
      %v1941 = vmul.f32 %v1163, %v1899
      %v1942 = vmul.f32 %v1165, %v1899
      %v1943 = vmul.f32 %v1167, %v1899
      %v1944 = vmul.f32 %v1171, %v1899
      %v1945 = vmul.f32 %v1173, %v1899
      %v1946 = vmul.f32 %v1175, %v1899
      %v1947 = vmul.f32 %v1177, %v1899
      %v1948 = vmul.f32 %v1181, %v1899
      %v1949 = vmul.f32 %v1183, %v1899
      %v1950 = vmul.f32 %v1185, %v1899
      %v1951 = vmul.f32 %v1187, %v1899
      %v1952 = vmul.f32 %v1191, %v1899
      %v1953 = vmul.f32 %v1193, %v1899
      %v1954 = vmul.f32 %v1195, %v1899
      %v1955 = vmul.f32 %v1197, %v1899
      %v1956 = vmul.f32 %v1201, %v1899
      %v1957 = vmul.f32 %v1203, %v1899
      %v1958 = vmul.f32 %v1205, %v1899
      %v1959 = vmul.f32 %v1207, %v1899
      %v1960 = vmul.f32 %v1211, %v1899
      %v1961 = vmul.f32 %v1213, %v1899
      %v1962 = vmul.f32 %v1215, %v1899
      %v1963 = vmul.f32 %v1217, %v1899
      %v1964 = vlaneseq
      %v1965 = vshrl.u32 %v1964, 7
      %v1966 = vsub.s32 0, %v1965
      %v1967 = vrot.slane %v1895, %v1966
      %v1968 = vadd.f32 %v1900, %v1967
      %v1969 = vadd.f32 %v1901, %v1967
      %v1970 = vadd.f32 %v1902, %v1967
      %v1971 = vadd.f32 %v1903, %v1967
      %v1972 = vadd.f32 %v1904, %v1967
      %v1973 = vadd.f32 %v1905, %v1967
      %v1974 = vadd.f32 %v1906, %v1967
      %v1975 = vadd.f32 %v1907, %v1967
      %v1976 = vadd.f32 %v1908, %v1967
      %v1977 = vadd.f32 %v1909, %v1967
      %v1978 = vadd.f32 %v1910, %v1967
      %v1979 = vadd.f32 %v1911, %v1967
      %v1980 = vadd.f32 %v1912, %v1967
      %v1981 = vadd.f32 %v1913, %v1967
      %v1982 = vadd.f32 %v1914, %v1967
      %v1983 = vadd.f32 %v1915, %v1967
      %v1984 = vadd.f32 %v1916, %v1967
      %v1985 = vadd.f32 %v1917, %v1967
      %v1986 = vadd.f32 %v1918, %v1967
      %v1987 = vadd.f32 %v1919, %v1967
      %v1988 = vadd.f32 %v1920, %v1967
      %v1989 = vadd.f32 %v1921, %v1967
      %v1990 = vadd.f32 %v1922, %v1967
      %v1991 = vadd.f32 %v1923, %v1967
      %v1992 = vadd.f32 %v1924, %v1967
      %v1993 = vadd.f32 %v1925, %v1967
      %v1994 = vadd.f32 %v1926, %v1967
      %v1995 = vadd.f32 %v1927, %v1967
      %v1996 = vadd.f32 %v1928, %v1967
      %v1997 = vadd.f32 %v1929, %v1967
      %v1998 = vadd.f32 %v1930, %v1967
      %v1999 = vadd.f32 %v1931, %v1967
      %v2000 = vadd.f32 %v1932, %v1967
      %v2001 = vadd.f32 %v1933, %v1967
      %v2002 = vadd.f32 %v1934, %v1967
      %v2003 = vadd.f32 %v1935, %v1967
      %v2004 = vadd.f32 %v1936, %v1967
      %v2005 = vadd.f32 %v1937, %v1967
      %v2006 = vadd.f32 %v1938, %v1967
      %v2007 = vadd.f32 %v1939, %v1967
      %v2008 = vadd.f32 %v1940, %v1967
      %v2009 = vadd.f32 %v1941, %v1967
      %v2010 = vadd.f32 %v1942, %v1967
      %v2011 = vadd.f32 %v1943, %v1967
      %v2012 = vadd.f32 %v1944, %v1967
      %v2013 = vadd.f32 %v1945, %v1967
      %v2014 = vadd.f32 %v1946, %v1967
      %v2015 = vadd.f32 %v1947, %v1967
      %v2016 = vadd.f32 %v1948, %v1967
      %v2017 = vadd.f32 %v1949, %v1967
      %v2018 = vadd.f32 %v1950, %v1967
      %v2019 = vadd.f32 %v1951, %v1967
      %v2020 = vadd.f32 %v1952, %v1967
      %v2021 = vadd.f32 %v1953, %v1967
      %v2022 = vadd.f32 %v1954, %v1967
      %v2023 = vadd.f32 %v1955, %v1967
      %v2024 = vadd.f32 %v1956, %v1967
      %v2025 = vadd.f32 %v1957, %v1967
      %v2026 = vadd.f32 %v1958, %v1967
      %v2027 = vadd.f32 %v1959, %v1967
      %v2028 = vadd.f32 %v1960, %v1967
      %v2029 = vadd.f32 %v1961, %v1967
      %v2030 = vadd.f32 %v1962, %v1967
      %v2031 = vadd.f32 %v1963, %v1967
      %v2032 = vmax.f32 %v1968, 0.0
      %v2033 = vmax.f32 %v1969, 0.0
      %v2034 = vmax.f32 %v1970, 0.0
      %v2035 = vmax.f32 %v1971, 0.0
      %v2036 = vmax.f32 %v1972, 0.0
      %v2037 = vmax.f32 %v1973, 0.0
      %v2038 = vmax.f32 %v1974, 0.0
      %v2039 = vmax.f32 %v1975, 0.0
      %v2040 = vmax.f32 %v1976, 0.0
      %v2041 = vmax.f32 %v1977, 0.0
      %v2042 = vmax.f32 %v1978, 0.0
      %v2043 = vmax.f32 %v1979, 0.0
      %v2044 = vmax.f32 %v1980, 0.0
      %v2045 = vmax.f32 %v1981, 0.0
      %v2046 = vmax.f32 %v1982, 0.0
      %v2047 = vmax.f32 %v1983, 0.0
      %v2048 = vmax.f32 %v1984, 0.0
      %v2049 = vmax.f32 %v1985, 0.0
      %v2050 = vmax.f32 %v1986, 0.0
      %v2051 = vmax.f32 %v1987, 0.0
      %v2052 = vmax.f32 %v1988, 0.0
      %v2053 = vmax.f32 %v1989, 0.0
      %v2054 = vmax.f32 %v1990, 0.0
      %v2055 = vmax.f32 %v1991, 0.0
      %v2056 = vmax.f32 %v1992, 0.0
      %v2057 = vmax.f32 %v1993, 0.0
      %v2058 = vmax.f32 %v1994, 0.0
      %v2059 = vmax.f32 %v1995, 0.0
      %v2060 = vmax.f32 %v1996, 0.0
      %v2061 = vmax.f32 %v1997, 0.0
      %v2062 = vmax.f32 %v1998, 0.0
      %v2063 = vmax.f32 %v1999, 0.0
      %v2064 = vmax.f32 %v2000, 0.0
      %v2065 = vmax.f32 %v2001, 0.0
      %v2066 = vmax.f32 %v2002, 0.0
      %v2067 = vmax.f32 %v2003, 0.0
      %v2068 = vmax.f32 %v2004, 0.0
      %v2069 = vmax.f32 %v2005, 0.0
      %v2070 = vmax.f32 %v2006, 0.0
      %v2071 = vmax.f32 %v2007, 0.0
      %v2072 = vmax.f32 %v2008, 0.0
      %v2073 = vmax.f32 %v2009, 0.0
      %v2074 = vmax.f32 %v2010, 0.0
      %v2075 = vmax.f32 %v2011, 0.0
      %v2076 = vmax.f32 %v2012, 0.0
      %v2077 = vmax.f32 %v2013, 0.0
      %v2078 = vmax.f32 %v2014, 0.0
      %v2079 = vmax.f32 %v2015, 0.0
      %v2080 = vmax.f32 %v2016, 0.0
      %v2081 = vmax.f32 %v2017, 0.0
      %v2082 = vmax.f32 %v2018, 0.0
      %v2083 = vmax.f32 %v2019, 0.0
      %v2084 = vmax.f32 %v2020, 0.0
      %v2085 = vmax.f32 %v2021, 0.0
      %v2086 = vmax.f32 %v2022, 0.0
      %v2087 = vmax.f32 %v2023, 0.0
      %v2088 = vmax.f32 %v2024, 0.0
      %v2089 = vmax.f32 %v2025, 0.0
      %v2090 = vmax.f32 %v2026, 0.0
      %v2091 = vmax.f32 %v2027, 0.0
      %v2092 = vmax.f32 %v2028, 0.0
      %v2093 = vmax.f32 %v2029, 0.0
      %v2094 = vmax.f32 %v2030, 0.0
      %v2095 = vmax.f32 %v2031, 0.0
      %v2096 = vpack.c.bf16 %v2034, %v2032
      %v2097 = vpack.c.bf16 %v2035, %v2033
      %v2098 = vpack.c.bf16 %v2038, %v2036
      %v2099 = vpack.c.bf16 %v2039, %v2037
      %v2100 = vpack.c.bf16 %v2042, %v2040
      %v2101 = vpack.c.bf16 %v2043, %v2041
      %v2102 = vpack.c.bf16 %v2046, %v2044
      %v2103 = vpack.c.bf16 %v2047, %v2045
      %v2104 = vpack.c.bf16 %v2050, %v2048
      %v2105 = vpack.c.bf16 %v2051, %v2049
      %v2106 = vpack.c.bf16 %v2054, %v2052
      %v2107 = vpack.c.bf16 %v2055, %v2053
      %v2108 = vpack.c.bf16 %v2058, %v2056
      %v2109 = vpack.c.bf16 %v2059, %v2057
      %v2110 = vpack.c.bf16 %v2062, %v2060
      %v2111 = vpack.c.bf16 %v2063, %v2061
      %v2112 = vpack.c.bf16 %v2066, %v2064
      %v2113 = vpack.c.bf16 %v2067, %v2065
      %v2114 = vpack.c.bf16 %v2070, %v2068
      %v2115 = vpack.c.bf16 %v2071, %v2069
      %v2116 = vpack.c.bf16 %v2074, %v2072
      %v2117 = vpack.c.bf16 %v2075, %v2073
      %v2118 = vpack.c.bf16 %v2078, %v2076
      %v2119 = vpack.c.bf16 %v2079, %v2077
      %v2120 = vpack.c.bf16 %v2082, %v2080
      %v2121 = vpack.c.bf16 %v2083, %v2081
      %v2122 = vpack.c.bf16 %v2086, %v2084
      %v2123 = vpack.c.bf16 %v2087, %v2085
      %v2124 = vpack.c.bf16 %v2090, %v2088
      %v2125 = vpack.c.bf16 %v2091, %v2089
      %v2126 = vpack.c.bf16 %v2094, %v2092
      %v2127 = vpack.c.bf16 %v2095, %v2093
      %v2128 = vmul.f32 %v1299, %v1899
      %v2129 = vmul.f32 %v1301, %v1899
      %v2130 = vmul.f32 %v1303, %v1899
      %v2131 = vmul.f32 %v1305, %v1899
      %v2132 = vmul.f32 %v1309, %v1899
      %v2133 = vmul.f32 %v1311, %v1899
      %v2134 = vmul.f32 %v1313, %v1899
      %v2135 = vmul.f32 %v1315, %v1899
      %v2136 = vmul.f32 %v1319, %v1899
      %v2137 = vmul.f32 %v1321, %v1899
      %v2138 = vmul.f32 %v1323, %v1899
      %v2139 = vmul.f32 %v1325, %v1899
      %v2140 = vmul.f32 %v1329, %v1899
      %v2141 = vmul.f32 %v1331, %v1899
      %v2142 = vmul.f32 %v1333, %v1899
      %v2143 = vmul.f32 %v1335, %v1899
      %v2144 = vmul.f32 %v1339, %v1899
      %v2145 = vmul.f32 %v1341, %v1899
      %v2146 = vmul.f32 %v1343, %v1899
      %v2147 = vmul.f32 %v1345, %v1899
      %v2148 = vmul.f32 %v1349, %v1899
      %v2149 = vmul.f32 %v1351, %v1899
      %v2150 = vmul.f32 %v1353, %v1899
      %v2151 = vmul.f32 %v1355, %v1899
      %v2152 = vmul.f32 %v1359, %v1899
      %v2153 = vmul.f32 %v1361, %v1899
      %v2154 = vmul.f32 %v1363, %v1899
      %v2155 = vmul.f32 %v1365, %v1899
      %v2156 = vmul.f32 %v1369, %v1899
      %v2157 = vmul.f32 %v1371, %v1899
      %v2158 = vmul.f32 %v1373, %v1899
      %v2159 = vmul.f32 %v1375, %v1899
      %v2160 = vmul.f32 %v1379, %v1899
      %v2161 = vmul.f32 %v1381, %v1899
      %v2162 = vmul.f32 %v1383, %v1899
      %v2163 = vmul.f32 %v1385, %v1899
      %v2164 = vmul.f32 %v1389, %v1899
      %v2165 = vmul.f32 %v1391, %v1899
      %v2166 = vmul.f32 %v1393, %v1899
      %v2167 = vmul.f32 %v1395, %v1899
      %v2168 = vmul.f32 %v1399, %v1899
      %v2169 = vmul.f32 %v1401, %v1899
      %v2170 = vmul.f32 %v1403, %v1899
      %v2171 = vmul.f32 %v1405, %v1899
      %v2172 = vmul.f32 %v1409, %v1899
      %v2173 = vmul.f32 %v1411, %v1899
      %v2174 = vmul.f32 %v1413, %v1899
      %v2175 = vmul.f32 %v1415, %v1899
      %v2176 = vmul.f32 %v1419, %v1899
      %v2177 = vmul.f32 %v1421, %v1899
      %v2178 = vmul.f32 %v1423, %v1899
      %v2179 = vmul.f32 %v1425, %v1899
      %v2180 = vmul.f32 %v1429, %v1899
      %v2181 = vmul.f32 %v1431, %v1899
      %v2182 = vmul.f32 %v1433, %v1899
      %v2183 = vmul.f32 %v1435, %v1899
      %v2184 = vmul.f32 %v1439, %v1899
      %v2185 = vmul.f32 %v1441, %v1899
      %v2186 = vmul.f32 %v1443, %v1899
      %v2187 = vmul.f32 %v1445, %v1899
      %v2188 = vmul.f32 %v1449, %v1899
      %v2189 = vmul.f32 %v1451, %v1899
      %v2190 = vmul.f32 %v1453, %v1899
      %v2191 = vmul.f32 %v1455, %v1899
      %v2192 = vadd.f32 %v2128, %v1967
      %v2193 = vadd.f32 %v2129, %v1967
      %v2194 = vadd.f32 %v2130, %v1967
      %v2195 = vadd.f32 %v2131, %v1967
      %v2196 = vadd.f32 %v2132, %v1967
      %v2197 = vadd.f32 %v2133, %v1967
      %v2198 = vadd.f32 %v2134, %v1967
      %v2199 = vadd.f32 %v2135, %v1967
      %v2200 = vadd.f32 %v2136, %v1967
      %v2201 = vadd.f32 %v2137, %v1967
      %v2202 = vadd.f32 %v2138, %v1967
      %v2203 = vadd.f32 %v2139, %v1967
      %v2204 = vadd.f32 %v2140, %v1967
      %v2205 = vadd.f32 %v2141, %v1967
      %v2206 = vadd.f32 %v2142, %v1967
      %v2207 = vadd.f32 %v2143, %v1967
      %v2208 = vadd.f32 %v2144, %v1967
      %v2209 = vadd.f32 %v2145, %v1967
      %v2210 = vadd.f32 %v2146, %v1967
      %v2211 = vadd.f32 %v2147, %v1967
      %v2212 = vadd.f32 %v2148, %v1967
      %v2213 = vadd.f32 %v2149, %v1967
      %v2214 = vadd.f32 %v2150, %v1967
      %v2215 = vadd.f32 %v2151, %v1967
      %v2216 = vadd.f32 %v2152, %v1967
      %v2217 = vadd.f32 %v2153, %v1967
      %v2218 = vadd.f32 %v2154, %v1967
      %v2219 = vadd.f32 %v2155, %v1967
      %v2220 = vadd.f32 %v2156, %v1967
      %v2221 = vadd.f32 %v2157, %v1967
      %v2222 = vadd.f32 %v2158, %v1967
      %v2223 = vadd.f32 %v2159, %v1967
      %v2224 = vadd.f32 %v2160, %v1967
      %v2225 = vadd.f32 %v2161, %v1967
      %v2226 = vadd.f32 %v2162, %v1967
      %v2227 = vadd.f32 %v2163, %v1967
      %v2228 = vadd.f32 %v2164, %v1967
      %v2229 = vadd.f32 %v2165, %v1967
      %v2230 = vadd.f32 %v2166, %v1967
      %v2231 = vadd.f32 %v2167, %v1967
      %v2232 = vadd.f32 %v2168, %v1967
      %v2233 = vadd.f32 %v2169, %v1967
      %v2234 = vadd.f32 %v2170, %v1967
      %v2235 = vadd.f32 %v2171, %v1967
      %v2236 = vadd.f32 %v2172, %v1967
      %v2237 = vadd.f32 %v2173, %v1967
      %v2238 = vadd.f32 %v2174, %v1967
      %v2239 = vadd.f32 %v2175, %v1967
      %v2240 = vadd.f32 %v2176, %v1967
      %v2241 = vadd.f32 %v2177, %v1967
      %v2242 = vadd.f32 %v2178, %v1967
      %v2243 = vadd.f32 %v2179, %v1967
      %v2244 = vadd.f32 %v2180, %v1967
      %v2245 = vadd.f32 %v2181, %v1967
      %v2246 = vadd.f32 %v2182, %v1967
      %v2247 = vadd.f32 %v2183, %v1967
      %v2248 = vadd.f32 %v2184, %v1967
      %v2249 = vadd.f32 %v2185, %v1967
      %v2250 = vadd.f32 %v2186, %v1967
      %v2251 = vadd.f32 %v2187, %v1967
      %v2252 = vadd.f32 %v2188, %v1967
      %v2253 = vadd.f32 %v2189, %v1967
      %v2254 = vadd.f32 %v2190, %v1967
      %v2255 = vadd.f32 %v2191, %v1967
      %v2256 = vmax.f32 %v2192, 0.0
      %v2257 = vmax.f32 %v2193, 0.0
      %v2258 = vmax.f32 %v2194, 0.0
      %v2259 = vmax.f32 %v2195, 0.0
      %v2260 = vmax.f32 %v2196, 0.0
      %v2261 = vmax.f32 %v2197, 0.0
      %v2262 = vmax.f32 %v2198, 0.0
      %v2263 = vmax.f32 %v2199, 0.0
      %v2264 = vmax.f32 %v2200, 0.0
      %v2265 = vmax.f32 %v2201, 0.0
      %v2266 = vmax.f32 %v2202, 0.0
      %v2267 = vmax.f32 %v2203, 0.0
      %v2268 = vmax.f32 %v2204, 0.0
      %v2269 = vmax.f32 %v2205, 0.0
      %v2270 = vmax.f32 %v2206, 0.0
      %v2271 = vmax.f32 %v2207, 0.0
      %v2272 = vmax.f32 %v2208, 0.0
      %v2273 = vmax.f32 %v2209, 0.0
      %v2274 = vmax.f32 %v2210, 0.0
      %v2275 = vmax.f32 %v2211, 0.0
      %v2276 = vmax.f32 %v2212, 0.0
      %v2277 = vmax.f32 %v2213, 0.0
      %v2278 = vmax.f32 %v2214, 0.0
      %v2279 = vmax.f32 %v2215, 0.0
      %v2280 = vmax.f32 %v2216, 0.0
      %v2281 = vmax.f32 %v2217, 0.0
      %v2282 = vmax.f32 %v2218, 0.0
      %v2283 = vmax.f32 %v2219, 0.0
      %v2284 = vmax.f32 %v2220, 0.0
      %v2285 = vmax.f32 %v2221, 0.0
      %v2286 = vmax.f32 %v2222, 0.0
      %v2287 = vmax.f32 %v2223, 0.0
      %v2288 = vmax.f32 %v2224, 0.0
      %v2289 = vmax.f32 %v2225, 0.0
      %v2290 = vmax.f32 %v2226, 0.0
      %v2291 = vmax.f32 %v2227, 0.0
      %v2292 = vmax.f32 %v2228, 0.0
      %v2293 = vmax.f32 %v2229, 0.0
      %v2294 = vmax.f32 %v2230, 0.0
      %v2295 = vmax.f32 %v2231, 0.0
      %v2296 = vmax.f32 %v2232, 0.0
      %v2297 = vmax.f32 %v2233, 0.0
      %v2298 = vmax.f32 %v2234, 0.0
      %v2299 = vmax.f32 %v2235, 0.0
      %v2300 = vmax.f32 %v2236, 0.0
      %v2301 = vmax.f32 %v2237, 0.0
      %v2302 = vmax.f32 %v2238, 0.0
      %v2303 = vmax.f32 %v2239, 0.0
      %v2304 = vmax.f32 %v2240, 0.0
      %v2305 = vmax.f32 %v2241, 0.0
      %v2306 = vmax.f32 %v2242, 0.0
      %v2307 = vmax.f32 %v2243, 0.0
      %v2308 = vmax.f32 %v2244, 0.0
      %v2309 = vmax.f32 %v2245, 0.0
      %v2310 = vmax.f32 %v2246, 0.0
      %v2311 = vmax.f32 %v2247, 0.0
      %v2312 = vmax.f32 %v2248, 0.0
      %v2313 = vmax.f32 %v2249, 0.0
      %v2314 = vmax.f32 %v2250, 0.0
      %v2315 = vmax.f32 %v2251, 0.0
      %v2316 = vmax.f32 %v2252, 0.0
      %v2317 = vmax.f32 %v2253, 0.0
      %v2318 = vmax.f32 %v2254, 0.0
      %v2319 = vmax.f32 %v2255, 0.0
      %v2320 = vpack.c.bf16 %v2258, %v2256
      %v2321 = vpack.c.bf16 %v2259, %v2257
      %v2322 = vpack.c.bf16 %v2262, %v2260
      %v2323 = vpack.c.bf16 %v2263, %v2261
      %v2324 = vpack.c.bf16 %v2266, %v2264
      %v2325 = vpack.c.bf16 %v2267, %v2265
      %v2326 = vpack.c.bf16 %v2270, %v2268
      %v2327 = vpack.c.bf16 %v2271, %v2269
      %v2328 = vpack.c.bf16 %v2274, %v2272
      %v2329 = vpack.c.bf16 %v2275, %v2273
      %v2330 = vpack.c.bf16 %v2278, %v2276
      %v2331 = vpack.c.bf16 %v2279, %v2277
      %v2332 = vpack.c.bf16 %v2282, %v2280
      %v2333 = vpack.c.bf16 %v2283, %v2281
      %v2334 = vpack.c.bf16 %v2286, %v2284
      %v2335 = vpack.c.bf16 %v2287, %v2285
      %v2336 = vpack.c.bf16 %v2290, %v2288
      %v2337 = vpack.c.bf16 %v2291, %v2289
      %v2338 = vpack.c.bf16 %v2294, %v2292
      %v2339 = vpack.c.bf16 %v2295, %v2293
      %v2340 = vpack.c.bf16 %v2298, %v2296
      %v2341 = vpack.c.bf16 %v2299, %v2297
      %v2342 = vpack.c.bf16 %v2302, %v2300
      %v2343 = vpack.c.bf16 %v2303, %v2301
      %v2344 = vpack.c.bf16 %v2306, %v2304
      %v2345 = vpack.c.bf16 %v2307, %v2305
      %v2346 = vpack.c.bf16 %v2310, %v2308
      %v2347 = vpack.c.bf16 %v2311, %v2309
      %v2348 = vpack.c.bf16 %v2314, %v2312
      %v2349 = vpack.c.bf16 %v2315, %v2313
      %v2350 = vpack.c.bf16 %v2318, %v2316
      %v2351 = vpack.c.bf16 %v2319, %v2317
      %v2384 = vunpack.c.l.b16 %v2096
      %v2385 = vunpack.c.l.b16 %v2097
      %v2386 = vunpack.c.h.b16 %v2096
      %v2387 = vunpack.c.h.b16 %v2097
      %v2388 = vunpack.c.l.b16 %v2098
      %v2389 = vunpack.c.l.b16 %v2099
      %v2390 = vunpack.c.h.b16 %v2098
      %v2391 = vunpack.c.h.b16 %v2099
      %v2392 = vunpack.c.l.b16 %v2100
      %v2393 = vunpack.c.l.b16 %v2101
      %v2394 = vunpack.c.h.b16 %v2100
      %v2395 = vunpack.c.h.b16 %v2101
      %v2396 = vunpack.c.l.b16 %v2102
      %v2397 = vunpack.c.l.b16 %v2103
      %v2398 = vunpack.c.h.b16 %v2102
      %v2399 = vunpack.c.h.b16 %v2103
      %v2400 = vunpack.c.l.b16 %v2104
      %v2401 = vunpack.c.l.b16 %v2105
      %v2402 = vunpack.c.h.b16 %v2104
      %v2403 = vunpack.c.h.b16 %v2105
      %v2404 = vunpack.c.l.b16 %v2106
      %v2405 = vunpack.c.l.b16 %v2107
      %v2406 = vunpack.c.h.b16 %v2106
      %v2407 = vunpack.c.h.b16 %v2107
      %v2408 = vunpack.c.l.b16 %v2108
      %v2409 = vunpack.c.l.b16 %v2109
      %v2410 = vunpack.c.h.b16 %v2108
      %v2411 = vunpack.c.h.b16 %v2109
      %v2412 = vunpack.c.l.b16 %v2110
      %v2413 = vunpack.c.l.b16 %v2111
      %v2414 = vunpack.c.h.b16 %v2110
      %v2415 = vunpack.c.h.b16 %v2111
      %v2416 = vunpack.c.l.b16 %v2112
      %v2417 = vunpack.c.l.b16 %v2113
      %v2418 = vunpack.c.h.b16 %v2112
      %v2419 = vunpack.c.h.b16 %v2113
      %v2420 = vunpack.c.l.b16 %v2114
      %v2421 = vunpack.c.l.b16 %v2115
      %v2422 = vunpack.c.h.b16 %v2114
      %v2423 = vunpack.c.h.b16 %v2115
      %v2424 = vunpack.c.l.b16 %v2116
      %v2425 = vunpack.c.l.b16 %v2117
      %v2426 = vunpack.c.h.b16 %v2116
      %v2427 = vunpack.c.h.b16 %v2117
      %v2428 = vunpack.c.l.b16 %v2118
      %v2429 = vunpack.c.l.b16 %v2119
      %v2430 = vunpack.c.h.b16 %v2118
      %v2431 = vunpack.c.h.b16 %v2119
      %v2432 = vunpack.c.l.b16 %v2120
      %v2433 = vunpack.c.l.b16 %v2121
      %v2434 = vunpack.c.h.b16 %v2120
      %v2435 = vunpack.c.h.b16 %v2121
      %v2436 = vunpack.c.l.b16 %v2122
      %v2437 = vunpack.c.l.b16 %v2123
      %v2438 = vunpack.c.h.b16 %v2122
      %v2439 = vunpack.c.h.b16 %v2123
      %v2440 = vunpack.c.l.b16 %v2124
      %v2441 = vunpack.c.l.b16 %v2125
      %v2442 = vunpack.c.h.b16 %v2124
      %v2443 = vunpack.c.h.b16 %v2125
      %v2444 = vunpack.c.l.b16 %v2126
      %v2445 = vunpack.c.l.b16 %v2127
      %v2446 = vunpack.c.h.b16 %v2126
      %v2447 = vunpack.c.h.b16 %v2127
      %v2448 = vpack.c.b16 %v2385, %v2384
      %v2449 = vpack.c.b16 %v2387, %v2386
      %v2450 = vpack.c.b16 %v2389, %v2388
      %v2451 = vpack.c.b16 %v2391, %v2390
      %v2452 = vpack.c.b16 %v2393, %v2392
      %v2453 = vpack.c.b16 %v2395, %v2394
      %v2454 = vpack.c.b16 %v2397, %v2396
      %v2455 = vpack.c.b16 %v2399, %v2398
      %v2456 = vpack.c.b16 %v2401, %v2400
      %v2457 = vpack.c.b16 %v2403, %v2402
      %v2458 = vpack.c.b16 %v2405, %v2404
      %v2459 = vpack.c.b16 %v2407, %v2406
      %v2460 = vpack.c.b16 %v2409, %v2408
      %v2461 = vpack.c.b16 %v2411, %v2410
      %v2462 = vpack.c.b16 %v2413, %v2412
      %v2463 = vpack.c.b16 %v2415, %v2414
      %v2464 = vpack.c.b16 %v2417, %v2416
      %v2465 = vpack.c.b16 %v2419, %v2418
      %v2466 = vpack.c.b16 %v2421, %v2420
      %v2467 = vpack.c.b16 %v2423, %v2422
      %v2468 = vpack.c.b16 %v2425, %v2424
      %v2469 = vpack.c.b16 %v2427, %v2426
      %v2470 = vpack.c.b16 %v2429, %v2428
      %v2471 = vpack.c.b16 %v2431, %v2430
      %v2472 = vpack.c.b16 %v2433, %v2432
      %v2473 = vpack.c.b16 %v2435, %v2434
      %v2474 = vpack.c.b16 %v2437, %v2436
      %v2475 = vpack.c.b16 %v2439, %v2438
      %v2476 = vpack.c.b16 %v2441, %v2440
      %v2477 = vpack.c.b16 %v2443, %v2442
      %v2478 = vpack.c.b16 %v2445, %v2444
      %v2479 = vpack.c.b16 %v2447, %v2446
      %2512 = vst [vmem:[%s170] sm:$0xff] %v2448
      %2513 = vst [vmem:[%s170 + $0x8] sm:$0xff] %v2449
      %2514 = vst [vmem:[%s170 + $0x20] sm:$0xff] %v2450
      %2515 = vst [vmem:[%s170 + $0x28] sm:$0xff] %v2451
      %2516 = vst [vmem:[%s170 + $0x40] sm:$0xff] %v2452
      %2517 = vst [vmem:[%s170 + $0x48] sm:$0xff] %v2453
      %2518 = vst [vmem:[%s170 + $0x60] sm:$0xff] %v2454
      %2519 = vst [vmem:[%s170 + $0x68] sm:$0xff] %v2455
      %2520 = vst [vmem:[%s170 + $0x80] sm:$0xff] %v2456
      %2521 = vst [vmem:[%s170 + $0x88] sm:$0xff] %v2457
      %2522 = vst [vmem:[%s170 + $0xa0] sm:$0xff] %v2458
      %2523 = vst [vmem:[%s170 + $0xa8] sm:$0xff] %v2459
      %2524 = vst [vmem:[%s170 + $0xc0] sm:$0xff] %v2460
      %2525 = vst [vmem:[%s170 + $0xc8] sm:$0xff] %v2461
      %2526 = vst [vmem:[%s170 + $0xe0] sm:$0xff] %v2462
      %2527 = vst [vmem:[%s170 + $0xe8] sm:$0xff] %v2463
      %2528 = vst [vmem:[%s170 + $0x100] sm:$0xff] %v2464
      %2529 = vst [vmem:[%s170 + $0x108] sm:$0xff] %v2465
      %2530 = vst [vmem:[%s170 + $0x120] sm:$0xff] %v2466
      %2531 = vst [vmem:[%s170 + $0x128] sm:$0xff] %v2467
      %2532 = vst [vmem:[%s170 + $0x140] sm:$0xff] %v2468
      %2533 = vst [vmem:[%s170 + $0x148] sm:$0xff] %v2469
      %2534 = vst [vmem:[%s170 + $0x160] sm:$0xff] %v2470
      %2535 = vst [vmem:[%s170 + $0x168] sm:$0xff] %v2471
      %2536 = vst [vmem:[%s170 + $0x180] sm:$0xff] %v2472
      %2537 = vst [vmem:[%s170 + $0x188] sm:$0xff] %v2473
      %2538 = vst [vmem:[%s170 + $0x1a0] sm:$0xff] %v2474
      %2539 = vst [vmem:[%s170 + $0x1a8] sm:$0xff] %v2475
      %2540 = vst [vmem:[%s170 + $0x1c0] sm:$0xff] %v2476
      %2541 = vst [vmem:[%s170 + $0x1c8] sm:$0xff] %v2477
      %2542 = vst [vmem:[%s170 + $0x1e0] sm:$0xff] %v2478
      %2543 = vst [vmem:[%s170 + $0x1e8] sm:$0xff] %v2479
      %v2576 = vunpack.c.l.b16 %v2320
      %v2577 = vunpack.c.l.b16 %v2321
      %v2578 = vunpack.c.h.b16 %v2320
      %v2579 = vunpack.c.h.b16 %v2321
      %v2580 = vunpack.c.l.b16 %v2322
      %v2581 = vunpack.c.l.b16 %v2323
      %v2582 = vunpack.c.h.b16 %v2322
      %v2583 = vunpack.c.h.b16 %v2323
      %v2584 = vunpack.c.l.b16 %v2324
      %v2585 = vunpack.c.l.b16 %v2325
      %v2586 = vunpack.c.h.b16 %v2324
      %v2587 = vunpack.c.h.b16 %v2325
      %v2588 = vunpack.c.l.b16 %v2326
      %v2589 = vunpack.c.l.b16 %v2327
      %v2590 = vunpack.c.h.b16 %v2326
      %v2591 = vunpack.c.h.b16 %v2327
      %v2592 = vunpack.c.l.b16 %v2328
      %v2593 = vunpack.c.l.b16 %v2329
      %v2594 = vunpack.c.h.b16 %v2328
      %v2595 = vunpack.c.h.b16 %v2329
      %v2596 = vunpack.c.l.b16 %v2330
      %v2597 = vunpack.c.l.b16 %v2331
      %v2598 = vunpack.c.h.b16 %v2330
      %v2599 = vunpack.c.h.b16 %v2331
      %v2600 = vunpack.c.l.b16 %v2332
      %v2601 = vunpack.c.l.b16 %v2333
      %v2602 = vunpack.c.h.b16 %v2332
      %v2603 = vunpack.c.h.b16 %v2333
      %v2604 = vunpack.c.l.b16 %v2334
      %v2605 = vunpack.c.l.b16 %v2335
      %v2606 = vunpack.c.h.b16 %v2334
      %v2607 = vunpack.c.h.b16 %v2335
      %v2608 = vunpack.c.l.b16 %v2336
      %v2609 = vunpack.c.l.b16 %v2337
      %v2610 = vunpack.c.h.b16 %v2336
      %v2611 = vunpack.c.h.b16 %v2337
      %v2612 = vunpack.c.l.b16 %v2338
      %v2613 = vunpack.c.l.b16 %v2339
      %v2614 = vunpack.c.h.b16 %v2338
      %v2615 = vunpack.c.h.b16 %v2339
      %v2616 = vunpack.c.l.b16 %v2340
      %v2617 = vunpack.c.l.b16 %v2341
      %v2618 = vunpack.c.h.b16 %v2340
      %v2619 = vunpack.c.h.b16 %v2341
      %v2620 = vunpack.c.l.b16 %v2342
      %v2621 = vunpack.c.l.b16 %v2343
      %v2622 = vunpack.c.h.b16 %v2342
      %v2623 = vunpack.c.h.b16 %v2343
      %v2624 = vunpack.c.l.b16 %v2344
      %v2625 = vunpack.c.l.b16 %v2345
      %v2626 = vunpack.c.h.b16 %v2344
      %v2627 = vunpack.c.h.b16 %v2345
      %v2628 = vunpack.c.l.b16 %v2346
      %v2629 = vunpack.c.l.b16 %v2347
      %v2630 = vunpack.c.h.b16 %v2346
      %v2631 = vunpack.c.h.b16 %v2347
      %v2632 = vunpack.c.l.b16 %v2348
      %v2633 = vunpack.c.l.b16 %v2349
      %v2634 = vunpack.c.h.b16 %v2348
      %v2635 = vunpack.c.h.b16 %v2349
      %v2636 = vunpack.c.l.b16 %v2350
      %v2637 = vunpack.c.l.b16 %v2351
      %v2638 = vunpack.c.h.b16 %v2350
      %v2639 = vunpack.c.h.b16 %v2351
      %v2640 = vpack.c.b16 %v2577, %v2576
      %v2641 = vpack.c.b16 %v2579, %v2578
      %v2642 = vpack.c.b16 %v2581, %v2580
      %v2643 = vpack.c.b16 %v2583, %v2582
      %v2644 = vpack.c.b16 %v2585, %v2584
      %v2645 = vpack.c.b16 %v2587, %v2586
      %v2646 = vpack.c.b16 %v2589, %v2588
      %v2647 = vpack.c.b16 %v2591, %v2590
      %v2648 = vpack.c.b16 %v2593, %v2592
      %v2649 = vpack.c.b16 %v2595, %v2594
      %v2650 = vpack.c.b16 %v2597, %v2596
      %v2651 = vpack.c.b16 %v2599, %v2598
      %v2652 = vpack.c.b16 %v2601, %v2600
      %v2653 = vpack.c.b16 %v2603, %v2602
      %v2654 = vpack.c.b16 %v2605, %v2604
      %v2655 = vpack.c.b16 %v2607, %v2606
      %v2656 = vpack.c.b16 %v2609, %v2608
      %v2657 = vpack.c.b16 %v2611, %v2610
      %v2658 = vpack.c.b16 %v2613, %v2612
      %v2659 = vpack.c.b16 %v2615, %v2614
      %v2660 = vpack.c.b16 %v2617, %v2616
      %v2661 = vpack.c.b16 %v2619, %v2618
      %v2662 = vpack.c.b16 %v2621, %v2620
      %v2663 = vpack.c.b16 %v2623, %v2622
      %v2664 = vpack.c.b16 %v2625, %v2624
      %v2665 = vpack.c.b16 %v2627, %v2626
      %v2666 = vpack.c.b16 %v2629, %v2628
      %v2667 = vpack.c.b16 %v2631, %v2630
      %v2668 = vpack.c.b16 %v2633, %v2632
      %v2669 = vpack.c.b16 %v2635, %v2634
      %v2670 = vpack.c.b16 %v2637, %v2636
      %v2671 = vpack.c.b16 %v2639, %v2638
      %s2704 = scalar_lea.vmem %s170, 16
      %2705 = vst [vmem:[%s2704] sm:$0xff] %v2640
      %2706 = vst [vmem:[%s2704 + $0x8] sm:$0xff] %v2641
      %2707 = vst [vmem:[%s2704 + $0x20] sm:$0xff] %v2642
      %2708 = vst [vmem:[%s2704 + $0x28] sm:$0xff] %v2643
      %2709 = vst [vmem:[%s2704 + $0x40] sm:$0xff] %v2644
      %2710 = vst [vmem:[%s2704 + $0x48] sm:$0xff] %v2645
      %2711 = vst [vmem:[%s2704 + $0x60] sm:$0xff] %v2646
      %2712 = vst [vmem:[%s2704 + $0x68] sm:$0xff] %v2647
      %2713 = vst [vmem:[%s2704 + $0x80] sm:$0xff] %v2648
      %2714 = vst [vmem:[%s2704 + $0x88] sm:$0xff] %v2649
      %2715 = vst [vmem:[%s2704 + $0xa0] sm:$0xff] %v2650
      %2716 = vst [vmem:[%s2704 + $0xa8] sm:$0xff] %v2651
      %2717 = vst [vmem:[%s2704 + $0xc0] sm:$0xff] %v2652
      %2718 = vst [vmem:[%s2704 + $0xc8] sm:$0xff] %v2653
      %2719 = vst [vmem:[%s2704 + $0xe0] sm:$0xff] %v2654
      %2720 = vst [vmem:[%s2704 + $0xe8] sm:$0xff] %v2655
      %2721 = vst [vmem:[%s2704 + $0x100] sm:$0xff] %v2656
      %2722 = vst [vmem:[%s2704 + $0x108] sm:$0xff] %v2657
      %2723 = vst [vmem:[%s2704 + $0x120] sm:$0xff] %v2658
      %2724 = vst [vmem:[%s2704 + $0x128] sm:$0xff] %v2659
      %2725 = vst [vmem:[%s2704 + $0x140] sm:$0xff] %v2660
      %2726 = vst [vmem:[%s2704 + $0x148] sm:$0xff] %v2661
      %2727 = vst [vmem:[%s2704 + $0x160] sm:$0xff] %v2662
      %2728 = vst [vmem:[%s2704 + $0x168] sm:$0xff] %v2663
      %2729 = vst [vmem:[%s2704 + $0x180] sm:$0xff] %v2664
      %2730 = vst [vmem:[%s2704 + $0x188] sm:$0xff] %v2665
      %2731 = vst [vmem:[%s2704 + $0x1a0] sm:$0xff] %v2666
      %2732 = vst [vmem:[%s2704 + $0x1a8] sm:$0xff] %v2667
      %2733 = vst [vmem:[%s2704 + $0x1c0] sm:$0xff] %v2668
      %2734 = vst [vmem:[%s2704 + $0x1c8] sm:$0xff] %v2669
      %2735 = vst [vmem:[%s2704 + $0x1e0] sm:$0xff] %v2670
      %2736 = vst [vmem:[%s2704 + $0x1e8] sm:$0xff] %v2671
      %p2737 = scmp.lt.s32.totalorder %s14, 1
      %s2738 = scalar_select %p2737, %s14, 1
      %s2739 = smul.addr %s2738, 128
      %s2740 = smul.addr %s2739, 4
      %s2741 = scalar_lea.vmem %s3, %s2740
      // Predicated region
      $region33: #{upsample_block.1} parent=31 // pred_check
        %p2742 = pneg %p100
      $region34: #{upsample_block.1} parent=31 // pred_check_branch
        %2744 = sbr.rel (%p2742) target = $region36
      $region35: #{upsample_block.1} parent=31 // pred_region
        _
      $region36: #{upsample_block.1} parent=31 // pred_fallthru
        _
    $region32: #{upsample_block.1} parent=5 // pred_fallthru
      _
    %p2745 = scmp.le.s32.totalorder 2, %s9
    // Predicated region
    $region37: #{upsample_block.1} parent=5 // pred_check
      %p2746 = pneg %p2745
    $region38: #{upsample_block.1} parent=5 // pred_check_branch
      %2748 = sbr.rel (%p2746) target = $region40
    $region39: #{upsample_block.1} parent=5 // pred_region
      %s2749 = ssub.s32 %s9, 2
      // Predicated region
      $region41: #{upsample_block.1} parent=39 // pred_check
        %p2750 = pneg %p106
      $region42: #{upsample_block.1} parent=39 // pred_check_branch
        %2752 = sbr.rel (%p2750) target = $region44
      $region43: #{upsample_block.1} parent=39 // pred_region
        %p2753 = scmp.lt.s32.totalorder %s15, 1
        %s2754 = scalar_select %p2753, %s15, 1
        %s2755 = smul.addr %s2754, 128
        %s2756 = smul.addr %s2755, 4
        %s2757 = scalar_lea.vmem %s3, %s2756
      $region44: #{upsample_block.1} parent=39 // pred_fallthru
        _
    $region40: #{upsample_block.1} parent=5 // pred_fallthru
      _
  $region6: #{upsample_block.1} parent=0 // loop_footer
    %s13 = sadd.s32 1, %s9
  $region7: #{upsample_block.1} parent=0 // loop_footer_branch
    %8 = sbr.rel target = $region3
  $region8: #{upsample_block.1} parent=0 // loop_exit
    _

</llo_original>
